<compile_context>
chip_gen: v7x
topology: tpu7x:2x2x1
jax: 0.10.0
libtpu: 0.0.40
codegen_flags: <defaults>
</compile_context>

<pallas_src>
import functools

import jax
import jax.numpy as jnp
import numpy as np
from jax import lax
from jax.experimental import pallas as pl
from jax.experimental.pallas import tpu as pltpu

H_PAD = 128  # lane-aligned per-gate width


def _round_up(x, m):
    return ((x + m - 1) // m) * m


# ----------------------------------------------------------------------------
# Pallas kernel: one direction of one GRU layer over one sequence chunk.
# Gate order follows PyTorch nn.GRU: (r, z, n), each padded to H_PAD lanes.
# ----------------------------------------------------------------------------
def _bigru_dir_kernel(gi_ref, whh_ref, bhn_ref, out_ref, h_ref, *, hp):
    """
    gi_ref : (T, B, 3*HP) bf16   precomputed x@W_ih^T + b_ih + [b_hh_r, b_hh_z, 0]
    whh_ref: (1, HP, 3*HP) bf16  W_hh^T (gate-padded)
    bhn_ref: (1, 1, HP) f32      b_hh of the n gate (must stay inside r * (...))
    out_ref: (T, B, HP) bf16     this direction's half of the layer output
    h_ref  : (B, HP) f32         hidden state carried across sequence chunks
    """
    d = pl.program_id(0)          # 0 = forward, 1 = backward
    c = pl.program_id(1)          # sequence-chunk index (per direction)
    T, B = gi_ref.shape[0], gi_ref.shape[1]

    @pl.when(c == 0)
    def _():
        h_ref[...] = jnp.zeros_like(h_ref)           # PyTorch h0 = zeros

    # Hoisted loads / broadcasts (once per chunk, not per step).
    whh = whh_ref[0]                                  # (HP, 3HP) bf16
    bhn = jnp.broadcast_to(bhn_ref[0], (B, hp))       # (B, HP) f32

    def step(t, h):
        # forward: local time t ; backward: reversed local time (no flips)
        tl = (1 - d) * t + d * (T - 1 - t)
        gi = gi_ref[tl].astype(jnp.float32)           # upcast; gate math in f32
        gh = jnp.dot(h.astype(jnp.bfloat16), whh,     # bf16 MXU operands
                     preferred_element_type=jnp.float32)
        r = jax.nn.sigmoid(gi[:, :hp] + gh[:, :hp])
        z = jax.nn.sigmoid(gi[:, hp:2 * hp] + gh[:, hp:2 * hp])
        n = jnp.tanh(gi[:, 2 * hp:] + r * (gh[:, 2 * hp:] + bhn))
        h_new = (1.0 - z) * n + z * h
        out_ref[tl] = h_new.astype(out_ref.dtype)     # lane-dense 128-wide store
        return h_new

    h_ref[...] = lax.fori_loop(0, T, step, h_ref[...], unroll=min(8, T))


def _choose_seq_chunk(S, B, hp, budget_bytes=6 * 1024 * 1024):
    # Largest divisor of S whose double-buffered bf16 gi+out blocks fit the budget.
    per_t = _round_up(B, 16) * (3 * hp + hp) * 2 * 2
    cap = max(1, min(256, budget_bytes // per_t))
    best = 1
    for t in range(1, S + 1):
        if S % t == 0 and t <= cap:
            best = t
    return best


def bigru_layer_recurrence(gi, w_hh_t, b_hn, hp=H_PAD, seq_chunk=None):
    """gi: (S, B, 6*HP) bf16 (fwd gates | bwd gates). Returns (S, B, 2*HP) bf16."""
    S, B, g6 = gi.shape
    assert g6 == 6 * hp
    T = seq_chunk if seq_chunk is not None else _choose_seq_chunk(S, B, hp)
    C = S // T

    def time_block(d, c):                 # fwd: chunk c ; bwd: chunk C-1-c
        return (1 - d) * c + d * (C - 1 - c)

    kern = functools.partial(_bigru_dir_kernel, hp=hp)

    # Advisory cost hint for XLA's scheduler around the per-layer custom call.
    flops = 2 * S * (2 * B * hp * 3 * hp) + 2 * S * B * 3 * hp * 10
    transcendentals = 2 * S * B * 3 * hp
    bytes_accessed = (gi.size * 2 + S * B * 2 * hp * 2
                      + w_hh_t.size * 2 + b_hn.size * 4)

    # Explicit VMEM budget (padded, double-buffered blocks + scratch, 2x headroom).
    b16, b8 = _round_up(B, 16), _round_up(B, 8)
    need = (2 * T * b16 * 3 * hp * 2 + 2 * T * b16 * hp * 2
            + 2 * hp * 3 * hp * 2 + 2 * 8 * hp * 4 + b8 * hp * 4)
    vmem_limit = int(min(48 * 1024 * 1024, max(16 * 1024 * 1024, 2 * need)))

    return pl.pallas_call(
        kern,
        out_shape=jax.ShapeDtypeStruct((S, B, 2 * hp), jnp.bfloat16),
        grid_spec=pltpu.PrefetchScalarGridSpec(
            num_scalar_prefetch=0,
            grid=(2, C),
            in_specs=[
                pl.BlockSpec((T, B, 3 * hp), lambda d, c: (time_block(d, c), 0, d)),
                pl.BlockSpec((1, hp, 3 * hp), lambda d, c: (d, 0, 0)),
                pl.BlockSpec((1, 1, hp), lambda d, c: (d, 0, 0)),
            ],
            out_specs=pl.BlockSpec((T, B, hp), lambda d, c: (time_block(d, c), 0, d)),
            scratch_shapes=[pltpu.VMEM((B, hp), jnp.float32)],
        ),
        compiler_params=pltpu.CompilerParams(
            dimension_semantics=("parallel", "arbitrary"),
            vmem_limit_bytes=vmem_limit,
        ),
        cost_estimate=pl.CostEstimate(flops=int(flops),
                                      transcendentals=int(transcendentals),
                                      bytes_accessed=int(bytes_accessed)),
    )(gi, w_hh_t, b_hn)


# ----------------------------------------------------------------------------
# Full BiRNN3 forward (eval mode: dropout is identity).
# ----------------------------------------------------------------------------
def birnn3_forward(x, params, num_layers, hp=H_PAD):
    """x: (B, S, input_size) batch_first, exactly like the PyTorch module."""
    x = x.astype(jnp.float32)
    layer_in = jnp.transpose(x, (1, 0, 2))            # (S, B, D) time-major
    for l in range(num_layers):
        lp = params["gru"][l]
        # ONE fused XLA matmul per layer for both directions' input projections.
        gi = (jnp.einsum("sbd,dg->sbg", layer_in.astype(jnp.float32), lp["w_ih_t"])
              + lp["b_gi"]).astype(jnp.bfloat16)      # (S, B, 6*HP) bf16 storage
        layer_in = bigru_layer_recurrence(gi, lp["w_hh_t"], lp["b_hn"], hp)

    # out[:, -1, :] -> Linear -> log_softmax (padded hidden columns are exactly 0).
    # TODO(synk): nn.Dropout(p=0.5) only applies when is_training=True; eval path is identity.
    last = layer_in[-1].astype(jnp.float32)           # (B, 2*HP)
    logits = last @ params["linear"]["w_t"] + params["linear"]["b"]
    return jax.nn.log_softmax(logits, axis=1)


# ----------------------------------------------------------------------------
# Parameters: raw PyTorch layout (for the reference) + kernel-friendly prep.
# ----------------------------------------------------------------------------
def init_raw_params(key, input_size, hidden_size, num_layers, num_classes):
    H = hidden_size
    bound = 1.0 / np.sqrt(H)
    raw = {"gru": []}
    for l in range(num_layers):
        d_in = input_size if l == 0 else 2 * H
        layer = {}
        for name in ("fwd", "bwd"):
            key, k1, k2, k3, k4 = jax.random.split(key, 5)
            layer[name] = {
                "w_ih": jax.random.uniform(k1, (3 * H, d_in), jnp.float32, -bound, bound),
                "w_hh": jax.random.uniform(k2, (3 * H, H), jnp.float32, -bound, bound),
                "b_ih": jax.random.uniform(k3, (3 * H,), jnp.float32, -bound, bound),
                "b_hh": jax.random.uniform(k4, (3 * H,), jnp.float32, -bound, bound),
            }
        raw["gru"].append(layer)
    key, k1, k2 = jax.random.split(key, 3)
    lb = 1.0 / np.sqrt(2 * H)
    raw["linear"] = {
        "w": jax.random.uniform(k1, (num_classes, 2 * H), jnp.float32, -lb, lb),
        "b": jax.random.uniform(k2, (num_classes,), jnp.float32, -lb, lb),
    }
    return raw


def prep_params(raw, hidden_size, hp=H_PAD):
    """Gate-pad everything to HP lanes, fuse fwd/bwd W_ih, fold b_hh[r,z] into b_gi,
    pre-cast W_hh^T to bf16. Padded weight/bias entries are zero -> padded hidden
    columns stay exactly 0."""
    H = hidden_size
    params = {"gru": []}
    for li, layer in enumerate(raw["gru"]):
        w_ih_parts, b_parts, whh_list, bhn_list = [], [], [], []
        for name in ("fwd", "bwd"):
            d = layer[name]
            w_ih_t = jnp.asarray(d["w_ih"]).T                 # (d_in, 3H)
            if li == 0:
                src = w_ih_t                                  # (input_size, 3H)
            else:
                # layer input is [fwd HP | bwd HP]; embed the (2H, 3H) weight rows
                src = jnp.zeros((2 * hp, 3 * H), jnp.float32)
                src = src.at[:H].set(w_ih_t[:H]).at[hp:hp + H].set(w_ih_t[H:])
            d_in = src.shape[0]
            b_hh = jnp.asarray(d["b_hh"])
            # fold b_hh's r/z parts into the precomputed-gi bias (n-gate bias stays in-kernel)
            b_gi = jnp.asarray(d["b_ih"]) + jnp.concatenate(
                [b_hh[:2 * H], jnp.zeros((H,), jnp.float32)])
            whh_t = jnp.asarray(d["w_hh"]).T                  # (H, 3H)

            w_pad = jnp.zeros((d_in, 3 * hp), jnp.float32)
            b_pad = jnp.zeros((3 * hp,), jnp.float32)
            whh_pad = jnp.zeros((hp, 3 * hp), jnp.float32)
            for g in range(3):
                w_pad = w_pad.at[:, g * hp:g * hp + H].set(src[:, g * H:(g + 1) * H])
                b_pad = b_pad.at[g * hp:g * hp + H].set(b_gi[g * H:(g + 1) * H])
                whh_pad = whh_pad.at[:H, g * hp:g * hp + H].set(whh_t[:, g * H:(g + 1) * H])
            bhn_pad = jnp.zeros((hp,), jnp.float32).at[:H].set(b_hh[2 * H:])

            w_ih_parts.append(w_pad)
            b_parts.append(b_pad)
            whh_list.append(whh_pad)
            bhn_list.append(bhn_pad)
        params["gru"].append({
            "w_ih_t": jnp.concatenate(w_ih_parts, axis=1),           # (d_in, 6*HP) f32
            "b_gi": jnp.concatenate(b_parts).reshape(1, 1, 6 * hp),  # (1,1,6*HP) f32
            "w_hh_t": jnp.stack(whh_list).astype(jnp.bfloat16),      # (2, HP, 3*HP) bf16
            "b_hn": jnp.stack(bhn_list).reshape(2, 1, hp),           # (2, 1, HP) f32
        })
    w_t = jnp.asarray(raw["linear"]["w"]).T                          # (2H, C)
    w_t_pad = jnp.zeros((2 * hp, w_t.shape[1]), jnp.float32)
    w_t_pad = w_t_pad.at[:H].set(w_t[:H]).at[hp:hp + H].set(w_t[H:])
    params["linear"] = {"w_t": w_t_pad,
                        "b": jnp.asarray(raw["linear"]["b"]).reshape(1, -1)}
    return params


# ----------------------------------------------------------------------------
# Pure-JAX f32 reference (PyTorch nn.GRU semantics) for the correctness check.
# ----------------------------------------------------------------------------
def _ref_gru_dir(x_tm, d, H):
    w_ih_t, w_hh_t = d["w_ih"].T, d["w_hh"].T
    b_ih, b_hh = d["b_ih"], d["b_hh"]

    def step(h, x_t):
        gi = x_t @ w_ih_t + b_ih
        gh = h @ w_hh_t + b_hh
        r = jax.nn.sigmoid(gi[:, :H] + gh[:, :H])
        z = jax.nn.sigmoid(gi[:, H:2 * H] + gh[:, H:2 * H])
        n = jnp.tanh(gi[:, 2 * H:] + r * gh[:, 2 * H:])
        h_new = (1.0 - z) * n + z * h
        return h_new, h_new

    h0 = jnp.zeros((x_tm.shape[1], H), jnp.float32)
    _, outs = lax.scan(step, h0, x_tm)
    return outs


def ref_forward(x, raw, H, num_layers):
    x_tm = jnp.transpose(x, (1, 0, 2)).astype(jnp.float32)
    layer_in = x_tm
    for l in range(num_layers):
        out_f = _ref_gru_dir(layer_in, raw["gru"][l]["fwd"], H)
        out_b = jnp.flip(_ref_gru_dir(jnp.flip(layer_in, 0),
                                      raw["gru"][l]["bwd"], H), 0)
        layer_in = jnp.concatenate([out_f, out_b], axis=-1)
    last = layer_in[-1]
    logits = last @ raw["linear"]["w"].T + raw["linear"]["b"]
    return jax.nn.log_softmax(logits, axis=1)


if __name__ == "__main__":
    batch, seq_len = 2, 8
    input_size, hidden_size, num_layers, num_classes = 16, 32, 2, 5

    key = jax.random.PRNGKey(0)
    key, kx = jax.random.split(key)
    x = jax.random.normal(kx, (batch, seq_len, input_size), jnp.float32)

    raw = init_raw_params(key, input_size, hidden_size, num_layers, num_classes)
    params = prep_params(raw, hidden_size)

    fwd = jax.jit(functools.partial(birnn3_forward, num_layers=num_layers))
    out = jax.block_until_ready(fwd(x, params))

    ref = jax.block_until_ready(ref_forward(x, raw, hidden_size, num_layers))
    # Tolerance widened consciously (per review): gi/out stored in bf16 and bf16 MXU
    # operands; gate math and accumulation remain f32.
    np.testing.assert_allclose(np.asarray(out), np.asarray(ref), rtol=5e-2, atol=5e-2)
    assert out.shape == (batch, num_classes)
    assert bool(jnp.all(jnp.isfinite(out)))

    print("KERNEL_OK")
</pallas_src>

<mosaic_0001>
module attributes {stable_mosaic.version = 11 : i64} {
  func.func @_bigru_dir_kernel(%arg0: i32, %arg1: i32, %arg2: memref<8x2x384xbf16, #tpu.memory_space<vmem>>, %arg3: memref<1x128x384xbf16, #tpu.memory_space<vmem>>, %arg4: memref<1x1x128xf32, #tpu.memory_space<vmem>>, %arg5: memref<8x2x128xbf16, #tpu.memory_space<vmem>>, %arg6: memref<2x128xf32, #tpu.memory_space<vmem>>) attributes {dimension_semantics = [#tpu.dimension_semantics<parallel>, #tpu.dimension_semantics<arbitrary>], iteration_bounds = array<i64: 2, 1>, scalar_prefetch = 0 : i64, scratch_operands = 1 : i64, tpu.core_type = #tpu.core_type<tc>, window_params = [{transform_indices = @transform_0, window_bounds = array<i64: 8, 2, 384>}, {transform_indices = @transform_1, window_bounds = array<i64: 1, 128, 384>}, {transform_indices = @transform_2, window_bounds = array<i64: 1, 1, 128>}, {transform_indices = @transform_3, window_bounds = array<i64: 8, 2, 128>}]} {
    %c0_i32 = arith.constant 0 : i32
    %0 = arith.cmpi eq, %arg1, %c0_i32 : i32
    %1 = arith.extui %0 : i1 to i32
    %c0_i32_0 = arith.constant 0 : i32
    %2 = arith.cmpi ne, %1, %c0_i32_0 : i32
    scf.if %2 {
      %cst_90 = arith.constant 0.000000e+00 : f32
      %355 = vector.broadcast %cst_90 : f32 to vector<2x128xf32>
      %c0_91 = arith.constant 0 : index
      %c0_92 = arith.constant 0 : index
      %356 = vector.load %arg6[%c0_91, %c0_92] : memref<2x128xf32, #tpu.memory_space<vmem>>, vector<2x128xf32>
      tpu.vector_store %arg6[%c0_91, %c0_92], %355 {strides = array<i32>} : memref<2x128xf32, #tpu.memory_space<vmem>>, vector<2x128xf32>,
    } else {
    }
    %c0 = arith.constant 0 : index
    %c0_1 = arith.constant 0 : index
    %c0_2 = arith.constant 0 : index
    %3 = vector.load %arg3[%c0, %c0_1, %c0_2] : memref<1x128x384xbf16, #tpu.memory_space<vmem>>, vector<1x128x384xbf16>
    %4 = vector.shape_cast %3 : vector<1x128x384xbf16> to vector<128x384xbf16>
    %c0_3 = arith.constant 0 : index
    %c0_4 = arith.constant 0 : index
    %c0_5 = arith.constant 0 : index
    %5 = vector.load %arg4[%c0_3, %c0_4, %c0_5] : memref<1x1x128xf32, #tpu.memory_space<vmem>>, vector<1x1x128xf32>
    %6 = vector.shape_cast %5 : vector<1x1x128xf32> to vector<1x128xf32>
    %7 = vector.shape_cast %6 : vector<1x128xf32> to vector<1x128xf32>
    %8 = vector.broadcast %7 : vector<1x128xf32> to vector<2x128xf32>
    %c0_6 = arith.constant 0 : index
    %c0_7 = arith.constant 0 : index
    %9 = vector.load %arg6[%c0_6, %c0_7] : memref<2x128xf32, #tpu.memory_space<vmem>>, vector<2x128xf32>
    %c0_i32_8 = arith.constant 0 : i32
    %c1_i32 = arith.constant 1 : i32
    %10 = arith.subi %c1_i32, %arg0 : i32
    %11 = arith.muli %10, %c0_i32_8 : i32
    %c7_i32 = arith.constant 7 : i32
    %12 = arith.subi %c7_i32, %c0_i32_8 : i32
    %13 = arith.muli %arg0, %12 : i32
    %14 = arith.addi %11, %13 : i32
    %15 = arith.index_cast %14 : i32 to index
    %c0_9 = arith.constant 0 : index
    %c0_10 = arith.constant 0 : index
    %16 = vector.load %arg2[%15, %c0_9, %c0_10] : memref<8x2x384xbf16, #tpu.memory_space<vmem>>, vector<1x2x384xbf16>
    %17 = vector.shape_cast %16 : vector<1x2x384xbf16> to vector<2x384xbf16>
    %18 = arith.extf %17 : vector<2x384xbf16> to vector<2x384xf32>
    %19 = arith.truncf %9 : vector<2x128xf32> to vector<2x128xbf16>
    %cst = arith.constant dense<0.000000e+00> : vector<2x384xf32>
    %20 = tpu.matmul %19, %4, %cst {dimension_numbers = #tpu.dot_dimension_numbers<[1], [0], [0], [1], [0, 0, 1, 1], [], []>} : vector<2x128xbf16>, vector<128x384xbf16>, vector<2x384xf32> -> vector<2x384xf32>
    %21 = vector.extract_strided_slice %18 {offsets = [0, 0], sizes = [2, 128], strides = [1, 1]} : vector<2x384xf32> to vector<2x128xf32>
    %22 = vector.extract_strided_slice %20 {offsets = [0, 0], sizes = [2, 128], strides = [1, 1]} : vector<2x384xf32> to vector<2x128xf32>
    %23 = arith.addf %21, %22 : vector<2x128xf32>
    %24 = arith.negf %23 : vector<2x128xf32>
    %25 = math.exp %24 : vector<2x128xf32>
    %cst_11 = arith.constant 1.000000e+00 : f32
    %26 = vector.broadcast %cst_11 : f32 to vector<2x128xf32>
    %27 = arith.addf %26, %25 : vector<2x128xf32>
    %28 = arith.divf %26, %27 : vector<2x128xf32>
    %29 = vector.extract_strided_slice %18 {offsets = [0, 128], sizes = [2, 128], strides = [1, 1]} : vector<2x384xf32> to vector<2x128xf32>
    %30 = vector.extract_strided_slice %20 {offsets = [0, 128], sizes = [2, 128], strides = [1, 1]} : vector<2x384xf32> to vector<2x128xf32>
    %31 = arith.addf %29, %30 : vector<2x128xf32>
    %32 = arith.negf %31 : vector<2x128xf32>
    %33 = math.exp %32 : vector<2x128xf32>
    %cst_12 = arith.constant 1.000000e+00 : f32
    %34 = vector.broadcast %cst_12 : f32 to vector<2x128xf32>
    %35 = arith.addf %34, %33 : vector<2x128xf32>
    %36 = arith.divf %34, %35 : vector<2x128xf32>
    %37 = vector.extract_strided_slice %18 {offsets = [0, 256], sizes = [2, 128], strides = [1, 1]} : vector<2x384xf32> to vector<2x128xf32>
    %38 = vector.extract_strided_slice %20 {offsets = [0, 256], sizes = [2, 128], strides = [1, 1]} : vector<2x384xf32> to vector<2x128xf32>
    %39 = arith.addf %38, %8 : vector<2x128xf32>
    %40 = arith.mulf %28, %39 : vector<2x128xf32>
    %41 = arith.addf %37, %40 : vector<2x128xf32>
    %42 = math.tanh %41 : vector<2x128xf32>
    %cst_13 = arith.constant 1.000000e+00 : f32
    %43 = vector.broadcast %cst_13 : f32 to vector<2x128xf32>
    %44 = arith.subf %43, %36 : vector<2x128xf32>
    %45 = arith.mulf %44, %42 : vector<2x128xf32>
    %46 = arith.mulf %36, %9 : vector<2x128xf32>
    %47 = arith.addf %45, %46 : vector<2x128xf32>
    %48 = arith.truncf %47 : vector<2x128xf32> to vector<2x128xbf16>
    %49 = arith.index_cast %14 : i32 to index
    %c0_14 = arith.constant 0 : index
    %c0_15 = arith.constant 0 : index
    %50 = vector.load %arg5[%49, %c0_14, %c0_15] : memref<8x2x128xbf16, #tpu.memory_space<vmem>>, vector<1x2x128xbf16>
    %51 = vector.shape_cast %50 : vector<1x2x128xbf16> to vector<2x128xbf16>
    %52 = vector.shape_cast %48 : vector<2x128xbf16> to vector<1x2x128xbf16>
    tpu.vector_store %arg5[%49, %c0_14, %c0_15], %52 {strides = array<i32>} : memref<8x2x128xbf16, #tpu.memory_space<vmem>>, vector<1x2x128xbf16>,
    %c1_i32_16 = arith.constant 1 : i32
    %c1_i32_17 = arith.constant 1 : i32
    %53 = arith.subi %c1_i32_17, %arg0 : i32
    %54 = arith.muli %53, %c1_i32_16 : i32
    %c7_i32_18 = arith.constant 7 : i32
    %55 = arith.subi %c7_i32_18, %c1_i32_16 : i32
    %56 = arith.muli %arg0, %55 : i32
    %57 = arith.addi %54, %56 : i32
    %58 = arith.index_cast %57 : i32 to index
    %c0_19 = arith.constant 0 : index
    %c0_20 = arith.constant 0 : index
    %59 = vector.load %arg2[%58, %c0_19, %c0_20] : memref<8x2x384xbf16, #tpu.memory_space<vmem>>, vector<1x2x384xbf16>
    %60 = vector.shape_cast %59 : vector<1x2x384xbf16> to vector<2x384xbf16>
    %61 = arith.extf %60 : vector<2x384xbf16> to vector<2x384xf32>
    %62 = arith.truncf %47 : vector<2x128xf32> to vector<2x128xbf16>
    %cst_21 = arith.constant dense<0.000000e+00> : vector<2x384xf32>
    %63 = tpu.matmul %62, %4, %cst_21 {dimension_numbers = #tpu.dot_dimension_numbers<[1], [0], [0], [1], [0, 0, 1, 1], [], []>} : vector<2x128xbf16>, vector<128x384xbf16>, vector<2x384xf32> -> vector<2x384xf32>
    %64 = vector.extract_strided_slice %61 {offsets = [0, 0], sizes = [2, 128], strides = [1, 1]} : vector<2x384xf32> to vector<2x128xf32>
    %65 = vector.extract_strided_slice %63 {offsets = [0, 0], sizes = [2, 128], strides = [1, 1]} : vector<2x384xf32> to vector<2x128xf32>
    %66 = arith.addf %64, %65 : vector<2x128xf32>
    %67 = arith.negf %66 : vector<2x128xf32>
    %68 = math.exp %67 : vector<2x128xf32>
    %cst_22 = arith.constant 1.000000e+00 : f32
    %69 = vector.broadcast %cst_22 : f32 to vector<2x128xf32>
    %70 = arith.addf %69, %68 : vector<2x128xf32>
    %71 = arith.divf %69, %70 : vector<2x128xf32>
    %72 = vector.extract_strided_slice %61 {offsets = [0, 128], sizes = [2, 128], strides = [1, 1]} : vector<2x384xf32> to vector<2x128xf32>
    %73 = vector.extract_strided_slice %63 {offsets = [0, 128], sizes = [2, 128], strides = [1, 1]} : vector<2x384xf32> to vector<2x128xf32>
    %74 = arith.addf %72, %73 : vector<2x128xf32>
    %75 = arith.negf %74 : vector<2x128xf32>
    %76 = math.exp %75 : vector<2x128xf32>
    %cst_23 = arith.constant 1.000000e+00 : f32
    %77 = vector.broadcast %cst_23 : f32 to vector<2x128xf32>
    %78 = arith.addf %77, %76 : vector<2x128xf32>
    %79 = arith.divf %77, %78 : vector<2x128xf32>
    %80 = vector.extract_strided_slice %61 {offsets = [0, 256], sizes = [2, 128], strides = [1, 1]} : vector<2x384xf32> to vector<2x128xf32>
    %81 = vector.extract_strided_slice %63 {offsets = [0, 256], sizes = [2, 128], strides = [1, 1]} : vector<2x384xf32> to vector<2x128xf32>
    %82 = arith.addf %81, %8 : vector<2x128xf32>
    %83 = arith.mulf %71, %82 : vector<2x128xf32>
    %84 = arith.addf %80, %83 : vector<2x128xf32>
    %85 = math.tanh %84 : vector<2x128xf32>
    %cst_24 = arith.constant 1.000000e+00 : f32
    %86 = vector.broadcast %cst_24 : f32 to vector<2x128xf32>
    %87 = arith.subf %86, %79 : vector<2x128xf32>
    %88 = arith.mulf %87, %85 : vector<2x128xf32>
    %89 = arith.mulf %79, %47 : vector<2x128xf32>
    %90 = arith.addf %88, %89 : vector<2x128xf32>
    %91 = arith.truncf %90 : vector<2x128xf32> to vector<2x128xbf16>
    %92 = arith.index_cast %57 : i32 to index
    %c0_25 = arith.constant 0 : index
    %c0_26 = arith.constant 0 : index
    %93 = vector.load %arg5[%92, %c0_25, %c0_26] : memref<8x2x128xbf16, #tpu.memory_space<vmem>>, vector<1x2x128xbf16>
    %94 = vector.shape_cast %93 : vector<1x2x128xbf16> to vector<2x128xbf16>
    %95 = vector.shape_cast %91 : vector<2x128xbf16> to vector<1x2x128xbf16>
    tpu.vector_store %arg5[%92, %c0_25, %c0_26], %95 {strides = array<i32>} : memref<8x2x128xbf16, #tpu.memory_space<vmem>>, vector<1x2x128xbf16>,
    %c2_i32 = arith.constant 2 : i32
    %c1_i32_27 = arith.constant 1 : i32
    %96 = arith.subi %c1_i32_27, %arg0 : i32
    %97 = arith.muli %96, %c2_i32 : i32
    %c7_i32_28 = arith.constant 7 : i32
    %98 = arith.subi %c7_i32_28, %c2_i32 : i32
    %99 = arith.muli %arg0, %98 : i32
    %100 = arith.addi %97, %99 : i32
    %101 = arith.index_cast %100 : i32 to index
    %c0_29 = arith.constant 0 : index
    %c0_30 = arith.constant 0 : index
    %102 = vector.load %arg2[%101, %c0_29, %c0_30] : memref<8x2x384xbf16, #tpu.memory_space<vmem>>, vector<1x2x384xbf16>
    %103 = vector.shape_cast %102 : vector<1x2x384xbf16> to vector<2x384xbf16>
    %104 = arith.extf %103 : vector<2x384xbf16> to vector<2x384xf32>
    %105 = arith.truncf %90 : vector<2x128xf32> to vector<2x128xbf16>
    %cst_31 = arith.constant dense<0.000000e+00> : vector<2x384xf32>
    %106 = tpu.matmul %105, %4, %cst_31 {dimension_numbers = #tpu.dot_dimension_numbers<[1], [0], [0], [1], [0, 0, 1, 1], [], []>} : vector<2x128xbf16>, vector<128x384xbf16>, vector<2x384xf32> -> vector<2x384xf32>
    %107 = vector.extract_strided_slice %104 {offsets = [0, 0], sizes = [2, 128], strides = [1, 1]} : vector<2x384xf32> to vector<2x128xf32>
    %108 = vector.extract_strided_slice %106 {offsets = [0, 0], sizes = [2, 128], strides = [1, 1]} : vector<2x384xf32> to vector<2x128xf32>
    %109 = arith.addf %107, %108 : vector<2x128xf32>
    %110 = arith.negf %109 : vector<2x128xf32>
    %111 = math.exp %110 : vector<2x128xf32>
    %cst_32 = arith.constant 1.000000e+00 : f32
    %112 = vector.broadcast %cst_32 : f32 to vector<2x128xf32>
    %113 = arith.addf %112, %111 : vector<2x128xf32>
    %114 = arith.divf %112, %113 : vector<2x128xf32>
    %115 = vector.extract_strided_slice %104 {offsets = [0, 128], sizes = [2, 128], strides = [1, 1]} : vector<2x384xf32> to vector<2x128xf32>
    %116 = vector.extract_strided_slice %106 {offsets = [0, 128], sizes = [2, 128], strides = [1, 1]} : vector<2x384xf32> to vector<2x128xf32>
    %117 = arith.addf %115, %116 : vector<2x128xf32>
    %118 = arith.negf %117 : vector<2x128xf32>
    %119 = math.exp %118 : vector<2x128xf32>
    %cst_33 = arith.constant 1.000000e+00 : f32
    %120 = vector.broadcast %cst_33 : f32 to vector<2x128xf32>
    %121 = arith.addf %120, %119 : vector<2x128xf32>
    %122 = arith.divf %120, %121 : vector<2x128xf32>
    %123 = vector.extract_strided_slice %104 {offsets = [0, 256], sizes = [2, 128], strides = [1, 1]} : vector<2x384xf32> to vector<2x128xf32>
    %124 = vector.extract_strided_slice %106 {offsets = [0, 256], sizes = [2, 128], strides = [1, 1]} : vector<2x384xf32> to vector<2x128xf32>
    %125 = arith.addf %124, %8 : vector<2x128xf32>
    %126 = arith.mulf %114, %125 : vector<2x128xf32>
    %127 = arith.addf %123, %126 : vector<2x128xf32>
    %128 = math.tanh %127 : vector<2x128xf32>
    %cst_34 = arith.constant 1.000000e+00 : f32
    %129 = vector.broadcast %cst_34 : f32 to vector<2x128xf32>
    %130 = arith.subf %129, %122 : vector<2x128xf32>
    %131 = arith.mulf %130, %128 : vector<2x128xf32>
    %132 = arith.mulf %122, %90 : vector<2x128xf32>
    %133 = arith.addf %131, %132 : vector<2x128xf32>
    %134 = arith.truncf %133 : vector<2x128xf32> to vector<2x128xbf16>
    %135 = arith.index_cast %100 : i32 to index
    %c0_35 = arith.constant 0 : index
    %c0_36 = arith.constant 0 : index
    %136 = vector.load %arg5[%135, %c0_35, %c0_36] : memref<8x2x128xbf16, #tpu.memory_space<vmem>>, vector<1x2x128xbf16>
    %137 = vector.shape_cast %136 : vector<1x2x128xbf16> to vector<2x128xbf16>
    %138 = vector.shape_cast %134 : vector<2x128xbf16> to vector<1x2x128xbf16>
    tpu.vector_store %arg5[%135, %c0_35, %c0_36], %138 {strides = array<i32>} : memref<8x2x128xbf16, #tpu.memory_space<vmem>>, vector<1x2x128xbf16>,
    %c3_i32 = arith.constant 3 : i32
    %c1_i32_37 = arith.constant 1 : i32
    %139 = arith.subi %c1_i32_37, %arg0 : i32
    %140 = arith.muli %139, %c3_i32 : i32
    %c7_i32_38 = arith.constant 7 : i32
    %141 = arith.subi %c7_i32_38, %c3_i32 : i32
    %142 = arith.muli %arg0, %141 : i32
    %143 = arith.addi %140, %142 : i32
    %144 = arith.index_cast %143 : i32 to index
    %c0_39 = arith.constant 0 : index
    %c0_40 = arith.constant 0 : index
    %145 = vector.load %arg2[%144, %c0_39, %c0_40] : memref<8x2x384xbf16, #tpu.memory_space<vmem>>, vector<1x2x384xbf16>
    %146 = vector.shape_cast %145 : vector<1x2x384xbf16> to vector<2x384xbf16>
    %147 = arith.extf %146 : vector<2x384xbf16> to vector<2x384xf32>
    %148 = arith.truncf %133 : vector<2x128xf32> to vector<2x128xbf16>
    %cst_41 = arith.constant dense<0.000000e+00> : vector<2x384xf32>
    %149 = tpu.matmul %148, %4, %cst_41 {dimension_numbers = #tpu.dot_dimension_numbers<[1], [0], [0], [1], [0, 0, 1, 1], [], []>} : vector<2x128xbf16>, vector<128x384xbf16>, vector<2x384xf32> -> vector<2x384xf32>
    %150 = vector.extract_strided_slice %147 {offsets = [0, 0], sizes = [2, 128], strides = [1, 1]} : vector<2x384xf32> to vector<2x128xf32>
    %151 = vector.extract_strided_slice %149 {offsets = [0, 0], sizes = [2, 128], strides = [1, 1]} : vector<2x384xf32> to vector<2x128xf32>
    %152 = arith.addf %150, %151 : vector<2x128xf32>
    %153 = arith.negf %152 : vector<2x128xf32>
    %154 = math.exp %153 : vector<2x128xf32>
    %cst_42 = arith.constant 1.000000e+00 : f32
    %155 = vector.broadcast %cst_42 : f32 to vector<2x128xf32>
    %156 = arith.addf %155, %154 : vector<2x128xf32>
    %157 = arith.divf %155, %156 : vector<2x128xf32>
    %158 = vector.extract_strided_slice %147 {offsets = [0, 128], sizes = [2, 128], strides = [1, 1]} : vector<2x384xf32> to vector<2x128xf32>
    %159 = vector.extract_strided_slice %149 {offsets = [0, 128], sizes = [2, 128], strides = [1, 1]} : vector<2x384xf32> to vector<2x128xf32>
    %160 = arith.addf %158, %159 : vector<2x128xf32>
    %161 = arith.negf %160 : vector<2x128xf32>
    %162 = math.exp %161 : vector<2x128xf32>
    %cst_43 = arith.constant 1.000000e+00 : f32
    %163 = vector.broadcast %cst_43 : f32 to vector<2x128xf32>
    %164 = arith.addf %163, %162 : vector<2x128xf32>
    %165 = arith.divf %163, %164 : vector<2x128xf32>
    %166 = vector.extract_strided_slice %147 {offsets = [0, 256], sizes = [2, 128], strides = [1, 1]} : vector<2x384xf32> to vector<2x128xf32>
    %167 = vector.extract_strided_slice %149 {offsets = [0, 256], sizes = [2, 128], strides = [1, 1]} : vector<2x384xf32> to vector<2x128xf32>
    %168 = arith.addf %167, %8 : vector<2x128xf32>
    %169 = arith.mulf %157, %168 : vector<2x128xf32>
    %170 = arith.addf %166, %169 : vector<2x128xf32>
    %171 = math.tanh %170 : vector<2x128xf32>
    %cst_44 = arith.constant 1.000000e+00 : f32
    %172 = vector.broadcast %cst_44 : f32 to vector<2x128xf32>
    %173 = arith.subf %172, %165 : vector<2x128xf32>
    %174 = arith.mulf %173, %171 : vector<2x128xf32>
    %175 = arith.mulf %165, %133 : vector<2x128xf32>
    %176 = arith.addf %174, %175 : vector<2x128xf32>
    %177 = arith.truncf %176 : vector<2x128xf32> to vector<2x128xbf16>
    %178 = arith.index_cast %143 : i32 to index
    %c0_45 = arith.constant 0 : index
    %c0_46 = arith.constant 0 : index
    %179 = vector.load %arg5[%178, %c0_45, %c0_46] : memref<8x2x128xbf16, #tpu.memory_space<vmem>>, vector<1x2x128xbf16>
    %180 = vector.shape_cast %179 : vector<1x2x128xbf16> to vector<2x128xbf16>
    %181 = vector.shape_cast %177 : vector<2x128xbf16> to vector<1x2x128xbf16>
    tpu.vector_store %arg5[%178, %c0_45, %c0_46], %181 {strides = array<i32>} : memref<8x2x128xbf16, #tpu.memory_space<vmem>>, vector<1x2x128xbf16>,
    %c4_i32 = arith.constant 4 : i32
    %c1_i32_47 = arith.constant 1 : i32
    %182 = arith.subi %c1_i32_47, %arg0 : i32
    %183 = arith.muli %182, %c4_i32 : i32
    %c7_i32_48 = arith.constant 7 : i32
    %184 = arith.subi %c7_i32_48, %c4_i32 : i32
    %185 = arith.muli %arg0, %184 : i32
    %186 = arith.addi %183, %185 : i32
    %187 = arith.index_cast %186 : i32 to index
    %c0_49 = arith.constant 0 : index
    %c0_50 = arith.constant 0 : index
    %188 = vector.load %arg2[%187, %c0_49, %c0_50] : memref<8x2x384xbf16, #tpu.memory_space<vmem>>, vector<1x2x384xbf16>
    %189 = vector.shape_cast %188 : vector<1x2x384xbf16> to vector<2x384xbf16>
    %190 = arith.extf %189 : vector<2x384xbf16> to vector<2x384xf32>
    %191 = arith.truncf %176 : vector<2x128xf32> to vector<2x128xbf16>
    %cst_51 = arith.constant dense<0.000000e+00> : vector<2x384xf32>
    %192 = tpu.matmul %191, %4, %cst_51 {dimension_numbers = #tpu.dot_dimension_numbers<[1], [0], [0], [1], [0, 0, 1, 1], [], []>} : vector<2x128xbf16>, vector<128x384xbf16>, vector<2x384xf32> -> vector<2x384xf32>
    %193 = vector.extract_strided_slice %190 {offsets = [0, 0], sizes = [2, 128], strides = [1, 1]} : vector<2x384xf32> to vector<2x128xf32>
    %194 = vector.extract_strided_slice %192 {offsets = [0, 0], sizes = [2, 128], strides = [1, 1]} : vector<2x384xf32> to vector<2x128xf32>
    %195 = arith.addf %193, %194 : vector<2x128xf32>
    %196 = arith.negf %195 : vector<2x128xf32>
    %197 = math.exp %196 : vector<2x128xf32>
    %cst_52 = arith.constant 1.000000e+00 : f32
    %198 = vector.broadcast %cst_52 : f32 to vector<2x128xf32>
    %199 = arith.addf %198, %197 : vector<2x128xf32>
    %200 = arith.divf %198, %199 : vector<2x128xf32>
    %201 = vector.extract_strided_slice %190 {offsets = [0, 128], sizes = [2, 128], strides = [1, 1]} : vector<2x384xf32> to vector<2x128xf32>
    %202 = vector.extract_strided_slice %192 {offsets = [0, 128], sizes = [2, 128], strides = [1, 1]} : vector<2x384xf32> to vector<2x128xf32>
    %203 = arith.addf %201, %202 : vector<2x128xf32>
    %204 = arith.negf %203 : vector<2x128xf32>
    %205 = math.exp %204 : vector<2x128xf32>
    %cst_53 = arith.constant 1.000000e+00 : f32
    %206 = vector.broadcast %cst_53 : f32 to vector<2x128xf32>
    %207 = arith.addf %206, %205 : vector<2x128xf32>
    %208 = arith.divf %206, %207 : vector<2x128xf32>
    %209 = vector.extract_strided_slice %190 {offsets = [0, 256], sizes = [2, 128], strides = [1, 1]} : vector<2x384xf32> to vector<2x128xf32>
    %210 = vector.extract_strided_slice %192 {offsets = [0, 256], sizes = [2, 128], strides = [1, 1]} : vector<2x384xf32> to vector<2x128xf32>
    %211 = arith.addf %210, %8 : vector<2x128xf32>
    %212 = arith.mulf %200, %211 : vector<2x128xf32>
    %213 = arith.addf %209, %212 : vector<2x128xf32>
    %214 = math.tanh %213 : vector<2x128xf32>
    %cst_54 = arith.constant 1.000000e+00 : f32
    %215 = vector.broadcast %cst_54 : f32 to vector<2x128xf32>
    %216 = arith.subf %215, %208 : vector<2x128xf32>
    %217 = arith.mulf %216, %214 : vector<2x128xf32>
    %218 = arith.mulf %208, %176 : vector<2x128xf32>
    %219 = arith.addf %217, %218 : vector<2x128xf32>
    %220 = arith.truncf %219 : vector<2x128xf32> to vector<2x128xbf16>
    %221 = arith.index_cast %186 : i32 to index
    %c0_55 = arith.constant 0 : index
    %c0_56 = arith.constant 0 : index
    %222 = vector.load %arg5[%221, %c0_55, %c0_56] : memref<8x2x128xbf16, #tpu.memory_space<vmem>>, vector<1x2x128xbf16>
    %223 = vector.shape_cast %222 : vector<1x2x128xbf16> to vector<2x128xbf16>
    %224 = vector.shape_cast %220 : vector<2x128xbf16> to vector<1x2x128xbf16>
    tpu.vector_store %arg5[%221, %c0_55, %c0_56], %224 {strides = array<i32>} : memref<8x2x128xbf16, #tpu.memory_space<vmem>>, vector<1x2x128xbf16>,
    %c5_i32 = arith.constant 5 : i32
    %c1_i32_57 = arith.constant 1 : i32
    %225 = arith.subi %c1_i32_57, %arg0 : i32
    %226 = arith.muli %225, %c5_i32 : i32
    %c7_i32_58 = arith.constant 7 : i32
    %227 = arith.subi %c7_i32_58, %c5_i32 : i32
    %228 = arith.muli %arg0, %227 : i32
    %229 = arith.addi %226, %228 : i32
    %230 = arith.index_cast %229 : i32 to index
    %c0_59 = arith.constant 0 : index
    %c0_60 = arith.constant 0 : index
    %231 = vector.load %arg2[%230, %c0_59, %c0_60] : memref<8x2x384xbf16, #tpu.memory_space<vmem>>, vector<1x2x384xbf16>
    %232 = vector.shape_cast %231 : vector<1x2x384xbf16> to vector<2x384xbf16>
    %233 = arith.extf %232 : vector<2x384xbf16> to vector<2x384xf32>
    %234 = arith.truncf %219 : vector<2x128xf32> to vector<2x128xbf16>
    %cst_61 = arith.constant dense<0.000000e+00> : vector<2x384xf32>
    %235 = tpu.matmul %234, %4, %cst_61 {dimension_numbers = #tpu.dot_dimension_numbers<[1], [0], [0], [1], [0, 0, 1, 1], [], []>} : vector<2x128xbf16>, vector<128x384xbf16>, vector<2x384xf32> -> vector<2x384xf32>
    %236 = vector.extract_strided_slice %233 {offsets = [0, 0], sizes = [2, 128], strides = [1, 1]} : vector<2x384xf32> to vector<2x128xf32>
    %237 = vector.extract_strided_slice %235 {offsets = [0, 0], sizes = [2, 128], strides = [1, 1]} : vector<2x384xf32> to vector<2x128xf32>
    %238 = arith.addf %236, %237 : vector<2x128xf32>
    %239 = arith.negf %238 : vector<2x128xf32>
    %240 = math.exp %239 : vector<2x128xf32>
    %cst_62 = arith.constant 1.000000e+00 : f32
    %241 = vector.broadcast %cst_62 : f32 to vector<2x128xf32>
    %242 = arith.addf %241, %240 : vector<2x128xf32>
    %243 = arith.divf %241, %242 : vector<2x128xf32>
    %244 = vector.extract_strided_slice %233 {offsets = [0, 128], sizes = [2, 128], strides = [1, 1]} : vector<2x384xf32> to vector<2x128xf32>
    %245 = vector.extract_strided_slice %235 {offsets = [0, 128], sizes = [2, 128], strides = [1, 1]} : vector<2x384xf32> to vector<2x128xf32>
    %246 = arith.addf %244, %245 : vector<2x128xf32>
    %247 = arith.negf %246 : vector<2x128xf32>
    %248 = math.exp %247 : vector<2x128xf32>
    %cst_63 = arith.constant 1.000000e+00 : f32
    %249 = vector.broadcast %cst_63 : f32 to vector<2x128xf32>
    %250 = arith.addf %249, %248 : vector<2x128xf32>
    %251 = arith.divf %249, %250 : vector<2x128xf32>
    %252 = vector.extract_strided_slice %233 {offsets = [0, 256], sizes = [2, 128], strides = [1, 1]} : vector<2x384xf32> to vector<2x128xf32>
    %253 = vector.extract_strided_slice %235 {offsets = [0, 256], sizes = [2, 128], strides = [1, 1]} : vector<2x384xf32> to vector<2x128xf32>
    %254 = arith.addf %253, %8 : vector<2x128xf32>
    %255 = arith.mulf %243, %254 : vector<2x128xf32>
    %256 = arith.addf %252, %255 : vector<2x128xf32>
    %257 = math.tanh %256 : vector<2x128xf32>
    %cst_64 = arith.constant 1.000000e+00 : f32
    %258 = vector.broadcast %cst_64 : f32 to vector<2x128xf32>
    %259 = arith.subf %258, %251 : vector<2x128xf32>
    %260 = arith.mulf %259, %257 : vector<2x128xf32>
    %261 = arith.mulf %251, %219 : vector<2x128xf32>
    %262 = arith.addf %260, %261 : vector<2x128xf32>
    %263 = arith.truncf %262 : vector<2x128xf32> to vector<2x128xbf16>
    %264 = arith.index_cast %229 : i32 to index
    %c0_65 = arith.constant 0 : index
    %c0_66 = arith.constant 0 : index
    %265 = vector.load %arg5[%264, %c0_65, %c0_66] : memref<8x2x128xbf16, #tpu.memory_space<vmem>>, vector<1x2x128xbf16>
    %266 = vector.shape_cast %265 : vector<1x2x128xbf16> to vector<2x128xbf16>
    %267 = vector.shape_cast %263 : vector<2x128xbf16> to vector<1x2x128xbf16>
    tpu.vector_store %arg5[%264, %c0_65, %c0_66], %267 {strides = array<i32>} : memref<8x2x128xbf16, #tpu.memory_space<vmem>>, vector<1x2x128xbf16>,
    %c6_i32 = arith.constant 6 : i32
    %c1_i32_67 = arith.constant 1 : i32
    %268 = arith.subi %c1_i32_67, %arg0 : i32
    %269 = arith.muli %268, %c6_i32 : i32
    %c7_i32_68 = arith.constant 7 : i32
    %270 = arith.subi %c7_i32_68, %c6_i32 : i32
    %271 = arith.muli %arg0, %270 : i32
    %272 = arith.addi %269, %271 : i32
    %273 = arith.index_cast %272 : i32 to index
    %c0_69 = arith.constant 0 : index
    %c0_70 = arith.constant 0 : index
    %274 = vector.load %arg2[%273, %c0_69, %c0_70] : memref<8x2x384xbf16, #tpu.memory_space<vmem>>, vector<1x2x384xbf16>
    %275 = vector.shape_cast %274 : vector<1x2x384xbf16> to vector<2x384xbf16>
    %276 = arith.extf %275 : vector<2x384xbf16> to vector<2x384xf32>
    %277 = arith.truncf %262 : vector<2x128xf32> to vector<2x128xbf16>
    %cst_71 = arith.constant dense<0.000000e+00> : vector<2x384xf32>
    %278 = tpu.matmul %277, %4, %cst_71 {dimension_numbers = #tpu.dot_dimension_numbers<[1], [0], [0], [1], [0, 0, 1, 1], [], []>} : vector<2x128xbf16>, vector<128x384xbf16>, vector<2x384xf32> -> vector<2x384xf32>
    %279 = vector.extract_strided_slice %276 {offsets = [0, 0], sizes = [2, 128], strides = [1, 1]} : vector<2x384xf32> to vector<2x128xf32>
    %280 = vector.extract_strided_slice %278 {offsets = [0, 0], sizes = [2, 128], strides = [1, 1]} : vector<2x384xf32> to vector<2x128xf32>
    %281 = arith.addf %279, %280 : vector<2x128xf32>
    %282 = arith.negf %281 : vector<2x128xf32>
    %283 = math.exp %282 : vector<2x128xf32>
    %cst_72 = arith.constant 1.000000e+00 : f32
    %284 = vector.broadcast %cst_72 : f32 to vector<2x128xf32>
    %285 = arith.addf %284, %283 : vector<2x128xf32>
    %286 = arith.divf %284, %285 : vector<2x128xf32>
    %287 = vector.extract_strided_slice %276 {offsets = [0, 128], sizes = [2, 128], strides = [1, 1]} : vector<2x384xf32> to vector<2x128xf32>
    %288 = vector.extract_strided_slice %278 {offsets = [0, 128], sizes = [2, 128], strides = [1, 1]} : vector<2x384xf32> to vector<2x128xf32>
    %289 = arith.addf %287, %288 : vector<2x128xf32>
    %290 = arith.negf %289 : vector<2x128xf32>
    %291 = math.exp %290 : vector<2x128xf32>
    %cst_73 = arith.constant 1.000000e+00 : f32
    %292 = vector.broadcast %cst_73 : f32 to vector<2x128xf32>
    %293 = arith.addf %292, %291 : vector<2x128xf32>
    %294 = arith.divf %292, %293 : vector<2x128xf32>
    %295 = vector.extract_strided_slice %276 {offsets = [0, 256], sizes = [2, 128], strides = [1, 1]} : vector<2x384xf32> to vector<2x128xf32>
    %296 = vector.extract_strided_slice %278 {offsets = [0, 256], sizes = [2, 128], strides = [1, 1]} : vector<2x384xf32> to vector<2x128xf32>
    %297 = arith.addf %296, %8 : vector<2x128xf32>
    %298 = arith.mulf %286, %297 : vector<2x128xf32>
    %299 = arith.addf %295, %298 : vector<2x128xf32>
    %300 = math.tanh %299 : vector<2x128xf32>
    %cst_74 = arith.constant 1.000000e+00 : f32
    %301 = vector.broadcast %cst_74 : f32 to vector<2x128xf32>
    %302 = arith.subf %301, %294 : vector<2x128xf32>
    %303 = arith.mulf %302, %300 : vector<2x128xf32>
    %304 = arith.mulf %294, %262 : vector<2x128xf32>
    %305 = arith.addf %303, %304 : vector<2x128xf32>
    %306 = arith.truncf %305 : vector<2x128xf32> to vector<2x128xbf16>
    %307 = arith.index_cast %272 : i32 to index
    %c0_75 = arith.constant 0 : index
    %c0_76 = arith.constant 0 : index
    %308 = vector.load %arg5[%307, %c0_75, %c0_76] : memref<8x2x128xbf16, #tpu.memory_space<vmem>>, vector<1x2x128xbf16>
    %309 = vector.shape_cast %308 : vector<1x2x128xbf16> to vector<2x128xbf16>
    %310 = vector.shape_cast %306 : vector<2x128xbf16> to vector<1x2x128xbf16>
    tpu.vector_store %arg5[%307, %c0_75, %c0_76], %310 {strides = array<i32>} : memref<8x2x128xbf16, #tpu.memory_space<vmem>>, vector<1x2x128xbf16>,
    %c7_i32_77 = arith.constant 7 : i32
    %c1_i32_78 = arith.constant 1 : i32
    %311 = arith.subi %c1_i32_78, %arg0 : i32
    %312 = arith.muli %311, %c7_i32_77 : i32
    %c7_i32_79 = arith.constant 7 : i32
    %313 = arith.subi %c7_i32_79, %c7_i32_77 : i32
    %314 = arith.muli %arg0, %313 : i32
    %315 = arith.addi %312, %314 : i32
    %316 = arith.index_cast %315 : i32 to index
    %c0_80 = arith.constant 0 : index
    %c0_81 = arith.constant 0 : index
    %317 = vector.load %arg2[%316, %c0_80, %c0_81] : memref<8x2x384xbf16, #tpu.memory_space<vmem>>, vector<1x2x384xbf16>
    %318 = vector.shape_cast %317 : vector<1x2x384xbf16> to vector<2x384xbf16>
    %319 = arith.extf %318 : vector<2x384xbf16> to vector<2x384xf32>
    %320 = arith.truncf %305 : vector<2x128xf32> to vector<2x128xbf16>
    %cst_82 = arith.constant dense<0.000000e+00> : vector<2x384xf32>
    %321 = tpu.matmul %320, %4, %cst_82 {dimension_numbers = #tpu.dot_dimension_numbers<[1], [0], [0], [1], [0, 0, 1, 1], [], []>} : vector<2x128xbf16>, vector<128x384xbf16>, vector<2x384xf32> -> vector<2x384xf32>
    %322 = vector.extract_strided_slice %319 {offsets = [0, 0], sizes = [2, 128], strides = [1, 1]} : vector<2x384xf32> to vector<2x128xf32>
    %323 = vector.extract_strided_slice %321 {offsets = [0, 0], sizes = [2, 128], strides = [1, 1]} : vector<2x384xf32> to vector<2x128xf32>
    %324 = arith.addf %322, %323 : vector<2x128xf32>
    %325 = arith.negf %324 : vector<2x128xf32>
    %326 = math.exp %325 : vector<2x128xf32>
    %cst_83 = arith.constant 1.000000e+00 : f32
    %327 = vector.broadcast %cst_83 : f32 to vector<2x128xf32>
    %328 = arith.addf %327, %326 : vector<2x128xf32>
    %329 = arith.divf %327, %328 : vector<2x128xf32>
    %330 = vector.extract_strided_slice %319 {offsets = [0, 128], sizes = [2, 128], strides = [1, 1]} : vector<2x384xf32> to vector<2x128xf32>
    %331 = vector.extract_strided_slice %321 {offsets = [0, 128], sizes = [2, 128], strides = [1, 1]} : vector<2x384xf32> to vector<2x128xf32>
    %332 = arith.addf %330, %331 : vector<2x128xf32>
    %333 = arith.negf %332 : vector<2x128xf32>
    %334 = math.exp %333 : vector<2x128xf32>
    %cst_84 = arith.constant 1.000000e+00 : f32
    %335 = vector.broadcast %cst_84 : f32 to vector<2x128xf32>
    %336 = arith.addf %335, %334 : vector<2x128xf32>
    %337 = arith.divf %335, %336 : vector<2x128xf32>
    %338 = vector.extract_strided_slice %319 {offsets = [0, 256], sizes = [2, 128], strides = [1, 1]} : vector<2x384xf32> to vector<2x128xf32>
    %339 = vector.extract_strided_slice %321 {offsets = [0, 256], sizes = [2, 128], strides = [1, 1]} : vector<2x384xf32> to vector<2x128xf32>
    %340 = arith.addf %339, %8 : vector<2x128xf32>
    %341 = arith.mulf %329, %340 : vector<2x128xf32>
    %342 = arith.addf %338, %341 : vector<2x128xf32>
    %343 = math.tanh %342 : vector<2x128xf32>
    %cst_85 = arith.constant 1.000000e+00 : f32
    %344 = vector.broadcast %cst_85 : f32 to vector<2x128xf32>
    %345 = arith.subf %344, %337 : vector<2x128xf32>
    %346 = arith.mulf %345, %343 : vector<2x128xf32>
    %347 = arith.mulf %337, %305 : vector<2x128xf32>
    %348 = arith.addf %346, %347 : vector<2x128xf32>
    %349 = arith.truncf %348 : vector<2x128xf32> to vector<2x128xbf16>
    %350 = arith.index_cast %315 : i32 to index
    %c0_86 = arith.constant 0 : index
    %c0_87 = arith.constant 0 : index
    %351 = vector.load %arg5[%350, %c0_86, %c0_87] : memref<8x2x128xbf16, #tpu.memory_space<vmem>>, vector<1x2x128xbf16>
    %352 = vector.shape_cast %351 : vector<1x2x128xbf16> to vector<2x128xbf16>
    %353 = vector.shape_cast %349 : vector<2x128xbf16> to vector<1x2x128xbf16>
    tpu.vector_store %arg5[%350, %c0_86, %c0_87], %353 {strides = array<i32>} : memref<8x2x128xbf16, #tpu.memory_space<vmem>>, vector<1x2x128xbf16>,
    %c8_i32 = arith.constant 8 : i32
    %c0_88 = arith.constant 0 : index
    %c0_89 = arith.constant 0 : index
    %354 = vector.load %arg6[%c0_88, %c0_89] : memref<2x128xf32, #tpu.memory_space<vmem>>, vector<2x128xf32>
    tpu.vector_store %arg6[%c0_88, %c0_89], %348 {strides = array<i32>} : memref<2x128xf32, #tpu.memory_space<vmem>>, vector<2x128xf32>,
    return
  }
  func.func @transform_0(%arg0: i32, %arg1: i32) -> (i32, i32, i32) {
    %c1_i32 = arith.constant 1 : i32
    %0 = arith.subi %c1_i32, %arg0 : i32
    %1 = arith.muli %0, %arg1 : i32
    %c0_i32 = arith.constant 0 : i32
    %2 = arith.subi %c0_i32, %arg1 : i32
    %3 = arith.muli %arg0, %2 : i32
    %4 = arith.addi %1, %3 : i32
    %c0_i32_0 = arith.constant 0 : i32
    %c0_i32_1 = arith.constant 0 : i32
    return %4, %c0_i32_0, %arg0 : i32, i32, i32
  }
  func.func @transform_1(%arg0: i32, %arg1: i32) -> (i32, i32, i32) {
    %c0_i32 = arith.constant 0 : i32
    %c0_i32_0 = arith.constant 0 : i32
    %c0_i32_1 = arith.constant 0 : i32
    return %arg0, %c0_i32, %c0_i32_0 : i32, i32, i32
  }
  func.func @transform_2(%arg0: i32, %arg1: i32) -> (i32, i32, i32) {
    %c0_i32 = arith.constant 0 : i32
    %c0_i32_0 = arith.constant 0 : i32
    %c0_i32_1 = arith.constant 0 : i32
    return %arg0, %c0_i32, %c0_i32_0 : i32, i32, i32
  }
  func.func @transform_3(%arg0: i32, %arg1: i32) -> (i32, i32, i32) {
    %c1_i32 = arith.constant 1 : i32
    %0 = arith.subi %c1_i32, %arg0 : i32
    %1 = arith.muli %0, %arg1 : i32
    %c0_i32 = arith.constant 0 : i32
    %2 = arith.subi %c0_i32, %arg1 : i32
    %3 = arith.muli %arg0, %2 : i32
    %4 = arith.addi %1, %3 : i32
    %c0_i32_0 = arith.constant 0 : i32
    %c0_i32_1 = arith.constant 0 : i32
    return %4, %c0_i32_0, %arg0 : i32, i32, i32
  }
}

</mosaic_0001>

<llo_original>
// kernel: birnn3_forward.2
$region0: #{birnn3_forward.2}
  #allocation0 [shape = 'u32[]', space=smem, size = 0x4, offset = 0x4, fixed_abs, tag = 'smem constant byte address 0x4 - core index']
  #allocation1 [shape = 'u32[144,128]{1,0:T(1,128)}', space=vmem, size = 0x12000, scoped, tag = 'internal scratch']
  #allocation2 [shape = 'f32[2,128]{1,0:T(2,128)}', space=vmem, size = 0x400, scoped, tag = 'scratch operand']
  %s0 = inlined_call_operand.vmem [shape: bf16[8,2,768], index: 0, kind: input, shape index: {}]
  %s1 = inlined_call_operand.vmem [shape: bf16[2,128,384], index: 1, kind: input, shape index: {}]
  %s2 = inlined_call_operand.vmem [shape: f32[2,1,128], index: 2, kind: input, shape index: {}]
  %s3 = inlined_call_operand.vmem [shape: bf16[8,2,256], index: 3, kind: output, shape index: {}]
  %s4 = sld [smem:[#allocation0]]
  $region127: #{birnn3_forward.2} parent=0
    _
  %s6 = ssub.s32 1, %s4
  %s7 = scalar_select 0, %s6, %s4
  $region1: #{birnn3_forward.2} parent=0
    #allocation3 [shape = 'u8[24576]{0}', space=vmem, size = 0x6000, scoped, tag = 'input window, operand 0']
    #allocation4 [shape = 'u8[8192]{0}', space=vmem, size = 0x2000, scoped, tag = 'output window, operand 0']
    loop: start=0, step=1, limit=4
    $region2: #{birnn3_forward.2} parent=1 // loop_pre_header
      _
    $region3: #{birnn3_forward.2} parent=1 // loop_header
      %s9 = sphi 0, %s13
      %p10 = scmp.ge.s32.totalorder %s9, 4
      %s16 = sphi 0, %s28
      %s17 = sphi 0, %s24
      %s18 = sphi 0, %s16
      %s19 = sphi 0, %s17
      %s20 = sphi 0, %s18
      %s21 = sphi 0, %s19
      %s43 = sphi 0, %s45
      %s46 = sphi 0, %s43
      %s47 = sphi 0, %s46
      %s63 = sphi 0, %s47
      %s69 = sphi 0, %s71
      %s72 = sphi 0, %s69
      %s73 = sphi 0, %s72
      %s89 = sphi 0, %s73
      %s95 = sphi 0, %s97
      %s98 = sphi 0, %s95
      %s99 = sphi 0, %s98
      %s115 = sphi 0, %s99
      %s133 = sphi 0, %s135
      %s136 = sphi 0, %s133
      %s137 = sphi 0, %s136
      %s153 = sphi 0, %s137
    $region4: #{birnn3_forward.2} parent=1 // loop_header_branch
      %12 = sbr.rel (%p10) target = $region8
    $region5: #{birnn3_forward.2} parent=1 // loop_body
      %s14 = ssub.s32 %s9, 1
      %s15 = ssub.s32 %s9, 2
      %s22 = sadd.s32 1, %s17
      %p23 = scmp.ge.s32.totalorder %s22, 1
      %s24 = scalar_select %p23, 0, %s22
      %s25 = sadd.s32 1, %s16
      %s26 = scalar_select %p23, %s25, %s16
      %p27 = scmp.ge.s32.totalorder %s26, 2
      %s28 = scalar_select %p27, 0, %s26
      %s29 = ssub.s32 1, %s16
      %s30 = smul.u32 %s29, %s17
      %s31 = ssub.s32 0, %s17
      %s32 = smul.u32 %s16, %s31
      %s33 = sadd.s32 %s30, %s32
      %s34 = ssub.s32 1, %s28
      %s35 = smul.u32 %s34, %s24
      %s36 = ssub.s32 0, %s24
      %s37 = smul.u32 %s28, %s36
      %s38 = sadd.s32 %s35, %s37
      %s39 = ssub.s32 %s33, %s38
      %s40 = ssub.s32 %s16, %s28
      %s41 = sor.u32 %s39, %s40
      %p42 = scmp.eq.s32.totalorder %s41, 0
      %s44 = sadd.s32 %s43, 1
      %s45 = scalar_select %p42, %s43, %s44
      %p48 = pneg %p42
      %p49 = scmp.eq.s32.totalorder %s9, 1
      %p50 = por %p48, %p49
      %p51 = scmp.ne.s32.totalorder %s43, %s46
      %p52 = scmp.eq.s32.totalorder %s9, 0
      %p53 = por %p51, %p52
      %p54 = scmp.ne.s32.totalorder %s43, %s46
      %p55 = scmp.eq.s32.totalorder %s14, 1
      %p56 = por %p54, %p55
      %p57 = scmp.ne.s32.totalorder %s46, %s47
      %p58 = scmp.eq.s32.totalorder %s14, 0
      %p59 = por %p57, %p58
      %p60 = scmp.ne.s32.totalorder %s46, %s47
      %p61 = scmp.eq.s32.totalorder %s15, 1
      %p62 = por %p60, %p61
      %p64 = scmp.ne.s32.totalorder %s47, %s63
      %p65 = scmp.eq.s32.totalorder %s15, 0
      %p66 = por %p64, %p65
      %s67 = ssub.s32 %s16, %s28
      %p68 = scmp.eq.s32.totalorder %s67, 0
      %s70 = sadd.s32 %s69, 1
      %s71 = scalar_select %p68, %s69, %s70
      %p74 = pneg %p68
      %p75 = scmp.eq.s32.totalorder %s9, 1
      %p76 = por %p74, %p75
      %p77 = scmp.ne.s32.totalorder %s69, %s72
      %p78 = scmp.eq.s32.totalorder %s9, 0
      %p79 = por %p77, %p78
      %p80 = scmp.ne.s32.totalorder %s69, %s72
      %p81 = scmp.eq.s32.totalorder %s14, 1
      %p82 = por %p80, %p81
      %p83 = scmp.ne.s32.totalorder %s72, %s73
      %p84 = scmp.eq.s32.totalorder %s14, 0
      %p85 = por %p83, %p84
      %p86 = scmp.ne.s32.totalorder %s72, %s73
      %p87 = scmp.eq.s32.totalorder %s15, 1
      %p88 = por %p86, %p87
      %p90 = scmp.ne.s32.totalorder %s73, %s89
      %p91 = scmp.eq.s32.totalorder %s15, 0
      %p92 = por %p90, %p91
      %s93 = ssub.s32 %s16, %s28
      %p94 = scmp.eq.s32.totalorder %s93, 0
      %s96 = sadd.s32 %s95, 1
      %s97 = scalar_select %p94, %s95, %s96
      %p100 = pneg %p94
      %p101 = scmp.eq.s32.totalorder %s9, 1
      %p102 = por %p100, %p101
      %p103 = scmp.ne.s32.totalorder %s95, %s98
      %p104 = scmp.eq.s32.totalorder %s9, 0
      %p105 = por %p103, %p104
      %p106 = scmp.ne.s32.totalorder %s95, %s98
      %p107 = scmp.eq.s32.totalorder %s14, 1
      %p108 = por %p106, %p107
      %p109 = scmp.ne.s32.totalorder %s98, %s99
      %p110 = scmp.eq.s32.totalorder %s14, 0
      %p111 = por %p109, %p110
      %p112 = scmp.ne.s32.totalorder %s98, %s99
      %p113 = scmp.eq.s32.totalorder %s15, 1
      %p114 = por %p112, %p113
      %p116 = scmp.ne.s32.totalorder %s99, %s115
      %p117 = scmp.eq.s32.totalorder %s15, 0
      %p118 = por %p116, %p117
      %s119 = ssub.s32 1, %s16
      %s120 = smul.u32 %s119, %s17
      %s121 = ssub.s32 0, %s17
      %s122 = smul.u32 %s16, %s121
      %s123 = sadd.s32 %s120, %s122
      %s124 = ssub.s32 1, %s28
      %s125 = smul.u32 %s124, %s24
      %s126 = ssub.s32 0, %s24
      %s127 = smul.u32 %s28, %s126
      %s128 = sadd.s32 %s125, %s127
      %s129 = ssub.s32 %s123, %s128
      %s130 = ssub.s32 %s16, %s28
      %s131 = sor.u32 %s129, %s130
      %p132 = scmp.eq.s32.totalorder %s131, 0
      %s134 = sadd.s32 %s133, 1
      %s135 = scalar_select %p132, %s133, %s134
      %p138 = pneg %p132
      %p139 = scmp.eq.s32.totalorder %s9, 1
      %p140 = por %p138, %p139
      %p141 = scmp.ne.s32.totalorder %s133, %s136
      %p142 = scmp.eq.s32.totalorder %s9, 0
      %p143 = por %p141, %p142
      %p144 = scmp.ne.s32.totalorder %s133, %s136
      %p145 = scmp.eq.s32.totalorder %s14, 1
      %p146 = por %p144, %p145
      %p147 = scmp.ne.s32.totalorder %s136, %s137
      %p148 = scmp.eq.s32.totalorder %s14, 0
      %p149 = por %p147, %p148
      %p150 = scmp.ne.s32.totalorder %s136, %s137
      %p151 = scmp.eq.s32.totalorder %s15, 1
      %p152 = por %p150, %p151
      %p154 = scmp.ne.s32.totalorder %s137, %s153
      %p155 = scmp.eq.s32.totalorder %s15, 0
      %p156 = por %p154, %p155
      %p157 = scmp.le.s32.totalorder 1, %s9
      %p158 = scmp.lt.s32.totalorder %s9, 3
      %p159 = pnand %p157, %p158
      %p160 = pneg %p159
      // Predicated region
      $region9: #{birnn3_forward.2} parent=5 // pred_check
        _
      $region10: #{birnn3_forward.2} parent=5 // pred_check_branch
        %162 = sbr.rel (%p159) target = $region12
      $region11: #{birnn3_forward.2} parent=5 // pred_region
        %s163 = ssub.s32 %s9, 1
      $region12: #{birnn3_forward.2} parent=5 // pred_fallthru
        _
      %p164 = scmp.lt.s32.totalorder %s9, 2
      // Predicated region
      $region13: #{birnn3_forward.2} parent=5 // pred_check
        %p165 = pneg %p164
      $region14: #{birnn3_forward.2} parent=5 // pred_check_branch
        %167 = sbr.rel (%p165) target = $region16
      $region15: #{birnn3_forward.2} parent=5 // pred_region
        // Predicated region
        $region17: #{birnn3_forward.2} parent=15 // pred_check
          %p168 = pneg %p53
        $region18: #{birnn3_forward.2} parent=15 // pred_check_branch
          %170 = sbr.rel (%p168) target = $region20
        $region19: #{birnn3_forward.2} parent=15 // pred_region
          %s171 = sand.u32 %s43, 1
          %s172 = sand.u32 %s43, 1
          %s173 = smul.addr %s172, 24
          %s174 = scalar_lea.vmem [#allocation3], %s173
          %s175 = ssub.s32 1, %s16
          %s176 = smul.u32 %s175, %s17
          %s177 = ssub.s32 0, %s17
          %s178 = smul.u32 %s16, %s177
          %s179 = sadd.s32 %s176, %s178
          %s180 = smul.u32 8, %s179
          %s181 = smul.u32 3, %s16
          %s182 = smul.addr %s180, 6
          %s183 = sadd.s32 %s181, %s182
          %s184 = scalar_lea.vmem %s0, %s183
          // Predicated region
          $region21: #{birnn3_forward.2} parent=19 // pred_check
            _
          $region22: #{birnn3_forward.2} parent=19 // pred_check_branch
            %186 = sbr.rel (0) target = $region24
          $region23: #{birnn3_forward.2} parent=19 // pred_region
            // Predicated region
            $region25: #{birnn3_forward.2} parent=23 // pred_check
              _
            $region26: #{birnn3_forward.2} parent=23 // pred_check_branch
              %188 = sbr.rel target = $region28
            $region27: #{birnn3_forward.2} parent=23 // pred_region
              // Predicated region
              $region40: #{birnn3_forward.2} parent=27 // pred_check
                _
              $region41: #{birnn3_forward.2} parent=27 // pred_check_branch
                %217 = sbr.rel (0) target = $region43
              $region42: #{birnn3_forward.2} parent=27 // pred_region
                loop: start=0, step=1, limit=1
                $region44: #{birnn3_forward.2} parent=42 // loop_pre_header
                  _
                $region45: #{birnn3_forward.2} parent=42 // loop_header
                  %s219 = sphi 0, %s223
                  %p220 = scmp.ge.s32.totalorder %s219, 1
                  %s224 = sphi %s184, %s184
                  %s225 = sphi %s174, %s174
                $region46: #{birnn3_forward.2} parent=42 // loop_header_branch
                  %222 = sbr.rel (%p220) target = $region50
                $region47: #{birnn3_forward.2} parent=42 // loop_body
                  _
                $region48: #{birnn3_forward.2} parent=42 // loop_footer
                  %s223 = sadd.s32 1, %s219
                $region49: #{birnn3_forward.2} parent=42 // loop_footer_branch
                  %218 = sbr.rel target = $region45
                $region50: #{birnn3_forward.2} parent=42 // loop_exit
                  _
                loop: start=0, step=1, limit=1
                $region51: #{birnn3_forward.2} parent=42 // loop_pre_header
                  _
                $region52: #{birnn3_forward.2} parent=42 // loop_header
                  %s228 = sphi 0, %s232
                  %p229 = scmp.ge.s32.totalorder %s228, 1
                  %s233 = sphi %s184, %s184
                  %s234 = sphi %s174, %s174
                $region53: #{birnn3_forward.2} parent=42 // loop_header_branch
                  %231 = sbr.rel (%p229) target = $region57
                $region54: #{birnn3_forward.2} parent=42 // loop_body
                  %v235 = vld [vmem:[%s233] sm:$0x7]
                  %236 = vst [vmem:[%s234] sm:$0x7] %v235
                  %v237 = vld [vmem:[%s233 + $0x6] sm:$0x7]
                  %238 = vst [vmem:[%s234 + $0x3] sm:$0x7] %v237
                  %v239 = vld [vmem:[%s233 + $0xc] sm:$0x7]
                  %240 = vst [vmem:[%s234 + $0x6] sm:$0x7] %v239
                  %v241 = vld [vmem:[%s233 + $0x12] sm:$0x7]
                  %242 = vst [vmem:[%s234 + $0x9] sm:$0x7] %v241
                  %v243 = vld [vmem:[%s233 + $0x18] sm:$0x7]
                  %244 = vst [vmem:[%s234 + $0xc] sm:$0x7] %v243
                  %v245 = vld [vmem:[%s233 + $0x1e] sm:$0x7]
                  %246 = vst [vmem:[%s234 + $0xf] sm:$0x7] %v245
                  %v247 = vld [vmem:[%s233 + $0x24] sm:$0x7]
                  %248 = vst [vmem:[%s234 + $0x12] sm:$0x7] %v247
                  %v249 = vld [vmem:[%s233 + $0x2a] sm:$0x7]
                  %250 = vst [vmem:[%s234 + $0x15] sm:$0x7] %v249
                $region55: #{birnn3_forward.2} parent=42 // loop_footer
                  %s232 = sadd.s32 1, %s228
                $region56: #{birnn3_forward.2} parent=42 // loop_footer_branch
                  %227 = sbr.rel target = $region52
                $region57: #{birnn3_forward.2} parent=42 // loop_exit
                  _
              $region43: #{birnn3_forward.2} parent=27 // pred_fallthru
                _
            $region28: #{birnn3_forward.2} parent=23 // pred_fallthru
              _
            // Predicated region
            $region29: #{birnn3_forward.2} parent=23 // pred_check
              _
            $region30: #{birnn3_forward.2} parent=23 // pred_check_branch
              %190 = sbr.rel (0) target = $region32
            $region31: #{birnn3_forward.2} parent=23 // pred_region
              loop: start=0, step=1, limit=1
              $region33: #{birnn3_forward.2} parent=31 // loop_pre_header
                _
              $region34: #{birnn3_forward.2} parent=31 // loop_header
                %s193 = sphi 0, %s197
                %p194 = scmp.ge.s32.totalorder %s193, 1
                %s198 = sphi %s184, %s184
                %s199 = sphi %s174, %s174
              $region35: #{birnn3_forward.2} parent=31 // loop_header_branch
                %196 = sbr.rel (%p194) target = $region39
              $region36: #{birnn3_forward.2} parent=31 // loop_body
                %v200 = vld [vmem:[%s198] sm:$0x7]
                %201 = vst [vmem:[%s199] sm:$0x7] %v200
                %v202 = vld [vmem:[%s198 + $0x6] sm:$0x7]
                %203 = vst [vmem:[%s199 + $0x3] sm:$0x7] %v202
                %v204 = vld [vmem:[%s198 + $0xc] sm:$0x7]
                %205 = vst [vmem:[%s199 + $0x6] sm:$0x7] %v204
                %v206 = vld [vmem:[%s198 + $0x12] sm:$0x7]
                %207 = vst [vmem:[%s199 + $0x9] sm:$0x7] %v206
                %v208 = vld [vmem:[%s198 + $0x18] sm:$0x7]
                %209 = vst [vmem:[%s199 + $0xc] sm:$0x7] %v208
                %v210 = vld [vmem:[%s198 + $0x1e] sm:$0x7]
                %211 = vst [vmem:[%s199 + $0xf] sm:$0x7] %v210
                %v212 = vld [vmem:[%s198 + $0x24] sm:$0x7]
                %213 = vst [vmem:[%s199 + $0x12] sm:$0x7] %v212
                %v214 = vld [vmem:[%s198 + $0x2a] sm:$0x7]
                %215 = vst [vmem:[%s199 + $0x15] sm:$0x7] %v214
              $region37: #{birnn3_forward.2} parent=31 // loop_footer
                %s197 = sadd.s32 1, %s193
              $region38: #{birnn3_forward.2} parent=31 // loop_footer_branch
                %192 = sbr.rel target = $region34
              $region39: #{birnn3_forward.2} parent=31 // loop_exit
                _
            $region32: #{birnn3_forward.2} parent=23 // pred_fallthru
              _
          $region24: #{birnn3_forward.2} parent=19 // pred_fallthru
            _
          %251 = vnop
        $region20: #{birnn3_forward.2} parent=15 // pred_fallthru
          _
        // Predicated region
        $region58: #{birnn3_forward.2} parent=15 // pred_check
          %p252 = pneg %p79
        $region59: #{birnn3_forward.2} parent=15 // pred_check_branch
          %254 = sbr.rel (%p252) target = $region61
        $region60: #{birnn3_forward.2} parent=15 // pred_region
          %p255 = scmp.lt.s32.totalorder %s16, 1
          %s256 = scalar_select %p255, %s16, 1
          %s257 = smul.addr %s256, 48
          %s258 = smul.addr %s257, 4
          %s259 = scalar_lea.vmem %s1, %s258
        $region61: #{birnn3_forward.2} parent=15 // pred_fallthru
          _
        // Predicated region
        $region62: #{birnn3_forward.2} parent=15 // pred_check
          %p260 = pneg %p105
        $region63: #{birnn3_forward.2} parent=15 // pred_check_branch
          %262 = sbr.rel (%p260) target = $region65
        $region64: #{birnn3_forward.2} parent=15 // pred_region
          %p263 = scmp.lt.s32.totalorder %s16, 1
          %s264 = scalar_select %p263, %s16, 1
          %s265 = scalar_lea.vmem %s2, %s264
        $region65: #{birnn3_forward.2} parent=15 // pred_fallthru
          _
      $region16: #{birnn3_forward.2} parent=5 // pred_fallthru
        _
      %p266 = scmp.le.s32.totalorder 1, %s9
      %p267 = scmp.lt.s32.totalorder %s9, 3
      %p268 = pnand %p266, %p267
      %p269 = pneg %p268
      // Predicated region
      $region66: #{birnn3_forward.2} parent=5 // pred_check
        _
      $region67: #{birnn3_forward.2} parent=5 // pred_check_branch
        %271 = sbr.rel (%p268) target = $region69
      $region68: #{birnn3_forward.2} parent=5 // pred_region
        %s272 = ssub.s32 %s9, 1
        %s273 = sand.u32 %s46, 1
        %s274 = sand.u32 %s46, 1
        %s275 = smul.addr %s274, 24
        %s276 = scalar_lea.vmem [#allocation3], %s275
        // Predicated region
        $region70: #{birnn3_forward.2} parent=68 // pred_check
          %p277 = pneg %p59
        $region71: #{birnn3_forward.2} parent=68 // pred_check_branch
          %279 = sbr.rel (%p277) target = $region73
        $region72: #{birnn3_forward.2} parent=68 // pred_region
          _
        $region73: #{birnn3_forward.2} parent=68 // pred_fallthru
          _
        %s280 = sand.u32 %s46, 1
        %s281 = sand.u32 %s46, 1
        %s282 = smul.addr %s281, 24
        %s283 = scalar_lea.vmem [#allocation3], %s282
        %p284 = pneg %p59
        %p285 = pneg %p56
        %p286 = scmp.lt.s32.totalorder %s18, 1
        %s287 = scalar_select %p286, %s18, 1
        %s288 = smul.addr %s287, 48
        %s289 = smul.addr %s288, 4
        %s290 = scalar_lea.vmem %s1, %s289
        %p291 = pneg %p85
        %p292 = pneg %p82
        %p293 = scmp.lt.s32.totalorder %s18, 1
        %s294 = scalar_select %p293, %s18, 1
        %s295 = scalar_lea.vmem %s2, %s294
        %p296 = pneg %p111
        %p297 = pneg %p108
        %p298 = pneg %p149
        %p299 = pneg %p146
        %s300 = sand.u32 %s136, 1
        %s301 = sand.u32 %s136, 1
        %s302 = smul.addr %s301, 8
        %s303 = scalar_lea.vmem [#allocation4], %s302
        %s304 = ssub.s32 1, %s18
        %s305 = smul.u32 %s304, %s19
        %s306 = ssub.s32 0, %s19
        %s307 = smul.u32 %s18, %s306
        %s308 = sadd.s32 %s305, %s307
        %s309 = smul.u32 8, %s308
        %s310 = smul.u32 3, %s18
        %p311 = scmp.lt.s32.totalorder %s18, 1
        %s312 = scalar_select %p311, %s18, 1
        %s313 = smul.addr %s312, 48
        %s314 = smul.addr %s313, 4
        %s315 = scalar_lea.vmem %s1, %s314
        %p316 = scmp.lt.s32.totalorder %s18, 1
        %s317 = scalar_select %p316, %s18, 1
        %s318 = scalar_lea.vmem %s2, %s317
        %s319 = ssub.s32 1, %s18
        %s320 = smul.u32 %s319, %s19
        %s321 = ssub.s32 0, %s19
        %s322 = smul.u32 %s18, %s321
        %s323 = sadd.s32 %s320, %s322
        %s324 = smul.u32 8, %s323
        %p326 = scmp.eq.s32.totalorder %s19, 0
        // Predicated region
        $region74: #{birnn3_forward.2} parent=68 // pred_check
          %p327 = pneg %p326
        $region75: #{birnn3_forward.2} parent=68 // pred_check_branch
          %329 = sbr.rel (%p327) target = $region77
        $region76: #{birnn3_forward.2} parent=68 // pred_region
          %330 = vst [vmem:[#allocation2] sm:$0x3] 0.0
        $region77: #{birnn3_forward.2} parent=68 // pred_fallthru
          _
        %v331 = vld [vmem:[%s315] sm:$0xff]
        %v332 = vld [vmem:[%s315 + $0x8] sm:$0xf]
        %v333 = vld [vmem:[%s315 + $0xc] sm:$0xff]
        %v334 = vld [vmem:[%s315 + $0x14] sm:$0xf]
        %v335 = vld [vmem:[%s315 + $0x18] sm:$0xff]
        %v336 = vld [vmem:[%s315 + $0x20] sm:$0xf]
        %v337 = vld [vmem:[%s315 + $0x24] sm:$0xff]
        %v338 = vld [vmem:[%s315 + $0x2c] sm:$0xf]
        %v339 = vld [vmem:[%s315 + $0x30] sm:$0xff]
        %v340 = vld [vmem:[%s315 + $0x38] sm:$0xf]
        %v341 = vld [vmem:[%s315 + $0x3c] sm:$0xff]
        %v342 = vld [vmem:[%s315 + $0x44] sm:$0xf]
        %v343 = vld [vmem:[%s315 + $0x48] sm:$0xff]
        %v344 = vld [vmem:[%s315 + $0x50] sm:$0xf]
        %v345 = vld [vmem:[%s315 + $0x54] sm:$0xff]
        %v346 = vld [vmem:[%s315 + $0x5c] sm:$0xf]
        %v347 = vld [vmem:[%s315 + $0x60] sm:$0xff]
        %v348 = vld [vmem:[%s315 + $0x68] sm:$0xf]
        %v349 = vld [vmem:[%s315 + $0x6c] sm:$0xff]
        %v350 = vld [vmem:[%s315 + $0x74] sm:$0xf]
        %v351 = vld [vmem:[%s315 + $0x78] sm:$0xff]
        %v352 = vld [vmem:[%s315 + $0x80] sm:$0xf]
        %v353 = vld [vmem:[%s315 + $0x84] sm:$0xff]
        %v354 = vld [vmem:[%s315 + $0x8c] sm:$0xf]
        %v355 = vld [vmem:[%s315 + $0x90] sm:$0xff]
        %v356 = vld [vmem:[%s315 + $0x98] sm:$0xf]
        %v357 = vld [vmem:[%s315 + $0x9c] sm:$0xff]
        %v358 = vld [vmem:[%s315 + $0xa4] sm:$0xf]
        %v359 = vld [vmem:[%s315 + $0xa8] sm:$0xff]
        %v360 = vld [vmem:[%s315 + $0xb0] sm:$0xf]
        %v361 = vld [vmem:[%s315 + $0xb4] sm:$0xff]
        %v362 = vld [vmem:[%s315 + $0xbc] sm:$0xf]
        %v363 = vld [vmem:[%s318] sm:$0x1]
        %v365 = vlaneseq
        %v366 = vshrl.u32 %v365, 7
        %v367 = vsub.s32 0, %v366
        %v368 = vrot.slane %v363, %v367
        %v370 = vld [vmem:[#allocation2] sm:$0x3]
        %s371 = smul.u32 %s18, 7
        %s372 = smul.u32 %s371, 3
        %s373 = scalar_lea.vmem %s276, %s372 [#allocation3]
        %v374 = vld [vmem:[%s373] sm:$0x7]
        %v375 = vunpack.c.l.bf16 %v374
        %v376 = vpack.c.bf16 %v370, %v370
        %v409 = vunpack.c.l.b16 %v331
        %v410 = vunpack.c.h.b16 %v331
        %v411 = vunpack.c.l.b16 %v332
        %v412 = vunpack.c.l.b16 %v333
        %v413 = vunpack.c.h.b16 %v333
        %v414 = vunpack.c.l.b16 %v334
        %v415 = vunpack.c.l.b16 %v335
        %v416 = vunpack.c.h.b16 %v335
        %v417 = vunpack.c.l.b16 %v336
        %v418 = vunpack.c.l.b16 %v337
        %v419 = vunpack.c.h.b16 %v337
        %v420 = vunpack.c.l.b16 %v338
        %v421 = vunpack.c.l.b16 %v339
        %v422 = vunpack.c.h.b16 %v339
        %v423 = vunpack.c.l.b16 %v340
        %v424 = vunpack.c.l.b16 %v341
        %v425 = vunpack.c.h.b16 %v341
        %v426 = vunpack.c.l.b16 %v342
        %v427 = vunpack.c.l.b16 %v343
        %v428 = vunpack.c.h.b16 %v343
        %v429 = vunpack.c.l.b16 %v344
        %v430 = vunpack.c.l.b16 %v345
        %v431 = vunpack.c.h.b16 %v345
        %v432 = vunpack.c.l.b16 %v346
        %v433 = vunpack.c.l.b16 %v347
        %v434 = vunpack.c.h.b16 %v347
        %v435 = vunpack.c.l.b16 %v348
        %v436 = vunpack.c.l.b16 %v349
        %v437 = vunpack.c.h.b16 %v349
        %v438 = vunpack.c.l.b16 %v350
        %v439 = vunpack.c.l.b16 %v351
        %v440 = vunpack.c.h.b16 %v351
        %v441 = vunpack.c.l.b16 %v352
        %v442 = vunpack.c.l.b16 %v353
        %v443 = vunpack.c.h.b16 %v353
        %v444 = vunpack.c.l.b16 %v354
        %v445 = vunpack.c.l.b16 %v355
        %v446 = vunpack.c.h.b16 %v355
        %v447 = vunpack.c.l.b16 %v356
        %v448 = vunpack.c.l.b16 %v357
        %v449 = vunpack.c.h.b16 %v357
        %v450 = vunpack.c.l.b16 %v358
        %v451 = vunpack.c.l.b16 %v359
        %v452 = vunpack.c.h.b16 %v359
        %v453 = vunpack.c.l.b16 %v360
        %v454 = vunpack.c.l.b16 %v361
        %v455 = vunpack.c.h.b16 %v361
        %v456 = vunpack.c.l.b16 %v362
        %v457 = vpack.c.b16 %v412, %v409
        %v458 = vpack.c.b16 %v413, %v410
        %v459 = vpack.c.b16 %v414, %v411
        %v460 = vpack.c.b16 %v418, %v415
        %v461 = vpack.c.b16 %v419, %v416
        %v462 = vpack.c.b16 %v420, %v417
        %v463 = vpack.c.b16 %v424, %v421
        %v464 = vpack.c.b16 %v425, %v422
        %v465 = vpack.c.b16 %v426, %v423
        %v466 = vpack.c.b16 %v430, %v427
        %v467 = vpack.c.b16 %v431, %v428
        %v468 = vpack.c.b16 %v432, %v429
        %v469 = vpack.c.b16 %v436, %v433
        %v470 = vpack.c.b16 %v437, %v434
        %v471 = vpack.c.b16 %v438, %v435
        %v472 = vpack.c.b16 %v442, %v439
        %v473 = vpack.c.b16 %v443, %v440
        %v474 = vpack.c.b16 %v444, %v441
        %v475 = vpack.c.b16 %v448, %v445
        %v476 = vpack.c.b16 %v449, %v446
        %v477 = vpack.c.b16 %v450, %v447
        %v478 = vpack.c.b16 %v454, %v451
        %v479 = vpack.c.b16 %v455, %v452
        %v480 = vpack.c.b16 %v456, %v453
        %505 = vmatprep.subr.bf16.mxu0 %v458
        %506 = vmatpush1.bf16.msra.mxu0 %v457
        %507 = vmatprep.subr.bf16.mxu0 %v461
        %508 = vmatpush1.bf16.msra.mxu0 %v460
        %509 = vmatprep.subr.bf16.mxu0 %v464
        %510 = vmatpush1.bf16.msra.mxu0 %v463
        %511 = vmatprep.subr.bf16.mxu0 %v467
        %512 = vmatpush1.bf16.msra.mxu0 %v466
        %513 = vmatprep.subr.bf16.mxu0 %v470
        %514 = vmatpush1.bf16.msra.mxu0 %v469
        %515 = vmatprep.subr.bf16.mxu0 %v473
        %516 = vmatpush1.bf16.msra.mxu0 %v472
        %517 = vmatprep.subr.bf16.mxu0 %v476
        %518 = vmatpush1.bf16.msra.mxu0 %v475
        %519 = vmatprep.subr.bf16.mxu0 %v479
        %520 = vmatpush1.bf16.msra.mxu0 %v478
        %521 = vmatprep.subr.bf16.mxu0 0
        %522 = vmatpush1.bf16.msra.mxu0 0
        %523 = vmatprep.subr.bf16.mxu0 0
        %524 = vmatpush1.bf16.msra.mxu0 0
        %525 = vmatprep.subr.bf16.mxu0 0
        %526 = vmatpush1.bf16.msra.mxu0 0
        %527 = vmatprep.subr.bf16.mxu0 0
        %528 = vmatpush1.bf16.msra.mxu0 0
        %529 = vmatprep.subr.bf16.mxu0 0
        %530 = vmatpush1.bf16.msra.mxu0 0
        %531 = vmatprep.subr.bf16.mxu0 0
        %532 = vmatpush1.bf16.msra.mxu0 0
        %533 = vmatprep.subr.bf16.mxu0 0
        %534 = vmatpush1.bf16.msra.mxu0 0
        %535 = vmatprep.subr.bf16.mxu0 0
        %536 = vmatpush1.bf16.msra.mxu0 0
        %537 = vmatprep.mubr.bf16.mxu0 0
        %538 = vmatmul.mubr.bf16.gmra.mrb[0].mxu0 %v376
        %v539 = vpop.f32.mrb[0].mxu0
        %v540 = vadd.f32 0.0, %v539
        %v541 = vpop.f32.mrb[0].mxu0
        %v542 = vadd.f32 0.0, %v541
        %v543 = vpop.f32.mrb[0].mxu0
        %v544 = vpop.f32.mrb[0].mxu0
        %545 = vdwg.mxu0
        %546 = vmatprep.subr.bf16.mxu0 0
        %547 = vmatpush1.bf16.msra.mxu0 %v459
        %548 = vmatprep.subr.bf16.mxu0 0
        %549 = vmatpush1.bf16.msra.mxu0 %v462
        %550 = vmatprep.subr.bf16.mxu0 0
        %551 = vmatpush1.bf16.msra.mxu0 %v465
        %552 = vmatprep.subr.bf16.mxu0 0
        %553 = vmatpush1.bf16.msra.mxu0 %v468
        %554 = vmatprep.subr.bf16.mxu0 0
        %555 = vmatpush1.bf16.msra.mxu0 %v471
        %556 = vmatprep.subr.bf16.mxu0 0
        %557 = vmatpush1.bf16.msra.mxu0 %v474
        %558 = vmatprep.subr.bf16.mxu0 0
        %559 = vmatpush1.bf16.msra.mxu0 %v477
        %560 = vmatprep.subr.bf16.mxu0 0
        %561 = vmatpush1.bf16.msra.mxu0 %v480
        %562 = vmatprep.subr.bf16.mxu0 0
        %563 = vmatpush1.bf16.msra.mxu0 0
        %564 = vmatprep.subr.bf16.mxu0 0
        %565 = vmatpush1.bf16.msra.mxu0 0
        %566 = vmatprep.subr.bf16.mxu0 0
        %567 = vmatpush1.bf16.msra.mxu0 0
        %568 = vmatprep.subr.bf16.mxu0 0
        %569 = vmatpush1.bf16.msra.mxu0 0
        %570 = vmatprep.subr.bf16.mxu0 0
        %571 = vmatpush1.bf16.msra.mxu0 0
        %572 = vmatprep.subr.bf16.mxu0 0
        %573 = vmatpush1.bf16.msra.mxu0 0
        %574 = vmatprep.subr.bf16.mxu0 0
        %575 = vmatpush1.bf16.msra.mxu0 0
        %576 = vmatprep.subr.bf16.mxu0 0
        %577 = vmatpush1.bf16.msra.mxu0 0
        %578 = vmatprep.mubr.bf16.mxu0 0
        %579 = vmatmul.mubr.bf16.gmra.mrb[0].mxu0 %v376
        %v580 = vpop.f32.mrb[0].mxu0
        %v581 = vadd.f32 0.0, %v580
        %v582 = vpop.f32.mrb[0].mxu0
        %v583 = vpop.f32.mrb[0].mxu0
        %v584 = vpop.f32.mrb[0].mxu0
        %585 = vdwg.mxu0
        %v586 = vadd.f32 %v375, %v540
        %v587 = vxor.u32 %v586, 2147483648
        %v588 = vmul.f32 %v587, 1.442695
        %v589 = vpow.pop %v588
        %v590 = vadd.f32 %v589, 1.0
        %v591 = vrcp.pop %v590
        %v592 = vmul.f32 1.0, %v591
        %v594 = vrot.slane %v375, 2
        %v596 = vadd.f32 %v594, %v542
        %v597 = vxor.u32 %v596, 2147483648
        %v598 = vmul.f32 %v597, 1.442695
        %v599 = vpow.pop %v598
        %v600 = vadd.f32 %v599, 1.0
        %v601 = vrcp.pop %v600
        %v602 = vmul.f32 1.0, %v601
        %v603 = vadd.f32 %v581, %v368
        %v604 = vmul.f32 %v592, %v603
        %v605 = vrot.slane %v375, 4
        %v607 = vadd.f32 %v605, %v604
        %v608 = vtanh.pop %v607
        %v609 = vsub.f32 1.0, %v602
        %v610 = vmul.f32 %v609, %v608
        %v611 = vmul.f32 %v602, %v370
        %v612 = vadd.f32 %v610, %v611
        %v613 = vpack.c.bf16 %v612, %v612
        %s614 = scalar_lea.vmem %s303, %s371 [#allocation4]
        %615 = vst [vmem:[%s614] sm:$0x1] %v613
        %s616 = ssub.s32 1, %s18
        %s617 = smul.u32 %s18, 6
        %s618 = sadd.s32 %s616, %s617
        %s619 = smul.u32 %s618, 3
        %s620 = scalar_lea.vmem %s276, %s619 [#allocation3]
        %v621 = vld [vmem:[%s620] sm:$0x7]
        %v622 = vunpack.c.l.bf16 %v621
        %623 = vmatprep.subr.bf16.mxu0 %v458
        %624 = vmatpush1.bf16.msra.mxu0 %v457
        %625 = vmatprep.subr.bf16.mxu0 %v461
        %626 = vmatpush1.bf16.msra.mxu0 %v460
        %627 = vmatprep.subr.bf16.mxu0 %v464
        %628 = vmatpush1.bf16.msra.mxu0 %v463
        %629 = vmatprep.subr.bf16.mxu0 %v467
        %630 = vmatpush1.bf16.msra.mxu0 %v466
        %631 = vmatprep.subr.bf16.mxu0 %v470
        %632 = vmatpush1.bf16.msra.mxu0 %v469
        %633 = vmatprep.subr.bf16.mxu0 %v473
        %634 = vmatpush1.bf16.msra.mxu0 %v472
        %635 = vmatprep.subr.bf16.mxu0 %v476
        %636 = vmatpush1.bf16.msra.mxu0 %v475
        %637 = vmatprep.subr.bf16.mxu0 %v479
        %638 = vmatpush1.bf16.msra.mxu0 %v478
        %639 = vmatprep.subr.bf16.mxu0 0
        %640 = vmatpush1.bf16.msra.mxu0 0
        %641 = vmatprep.subr.bf16.mxu0 0
        %642 = vmatpush1.bf16.msra.mxu0 0
        %643 = vmatprep.subr.bf16.mxu0 0
        %644 = vmatpush1.bf16.msra.mxu0 0
        %645 = vmatprep.subr.bf16.mxu0 0
        %646 = vmatpush1.bf16.msra.mxu0 0
        %647 = vmatprep.subr.bf16.mxu0 0
        %648 = vmatpush1.bf16.msra.mxu0 0
        %649 = vmatprep.subr.bf16.mxu0 0
        %650 = vmatpush1.bf16.msra.mxu0 0
        %651 = vmatprep.subr.bf16.mxu0 0
        %652 = vmatpush1.bf16.msra.mxu0 0
        %653 = vmatprep.subr.bf16.mxu0 0
        %654 = vmatpush1.bf16.msra.mxu0 0
        %655 = vmatprep.mubr.bf16.mxu0 0
        %656 = vmatmul.mubr.bf16.gmra.mrb[0].mxu0 %v613
        %v657 = vpop.f32.mrb[0].mxu0
        %v658 = vadd.f32 0.0, %v657
        %v659 = vpop.f32.mrb[0].mxu0
        %v660 = vadd.f32 0.0, %v659
        %v661 = vpop.f32.mrb[0].mxu0
        %v662 = vpop.f32.mrb[0].mxu0
        %663 = vdwg.mxu0
        %664 = vmatprep.subr.bf16.mxu0 0
        %665 = vmatpush1.bf16.msra.mxu0 %v459
        %666 = vmatprep.subr.bf16.mxu0 0
        %667 = vmatpush1.bf16.msra.mxu0 %v462
        %668 = vmatprep.subr.bf16.mxu0 0
        %669 = vmatpush1.bf16.msra.mxu0 %v465
        %670 = vmatprep.subr.bf16.mxu0 0
        %671 = vmatpush1.bf16.msra.mxu0 %v468
        %672 = vmatprep.subr.bf16.mxu0 0
        %673 = vmatpush1.bf16.msra.mxu0 %v471
        %674 = vmatprep.subr.bf16.mxu0 0
        %675 = vmatpush1.bf16.msra.mxu0 %v474
        %676 = vmatprep.subr.bf16.mxu0 0
        %677 = vmatpush1.bf16.msra.mxu0 %v477
        %678 = vmatprep.subr.bf16.mxu0 0
        %679 = vmatpush1.bf16.msra.mxu0 %v480
        %680 = vmatprep.subr.bf16.mxu0 0
        %681 = vmatpush1.bf16.msra.mxu0 0
        %682 = vmatprep.subr.bf16.mxu0 0
        %683 = vmatpush1.bf16.msra.mxu0 0
        %684 = vmatprep.subr.bf16.mxu0 0
        %685 = vmatpush1.bf16.msra.mxu0 0
        %686 = vmatprep.subr.bf16.mxu0 0
        %687 = vmatpush1.bf16.msra.mxu0 0
        %688 = vmatprep.subr.bf16.mxu0 0
        %689 = vmatpush1.bf16.msra.mxu0 0
        %690 = vmatprep.subr.bf16.mxu0 0
        %691 = vmatpush1.bf16.msra.mxu0 0
        %692 = vmatprep.subr.bf16.mxu0 0
        %693 = vmatpush1.bf16.msra.mxu0 0
        %694 = vmatprep.subr.bf16.mxu0 0
        %695 = vmatpush1.bf16.msra.mxu0 0
        %696 = vmatprep.mubr.bf16.mxu0 0
        %697 = vmatmul.mubr.bf16.gmra.mrb[0].mxu0 %v613
        %v698 = vpop.f32.mrb[0].mxu0
        %v699 = vadd.f32 0.0, %v698
        %v700 = vpop.f32.mrb[0].mxu0
        %v701 = vpop.f32.mrb[0].mxu0
        %v702 = vpop.f32.mrb[0].mxu0
        %703 = vdwg.mxu0
        %v704 = vadd.f32 %v622, %v658
        %v705 = vxor.u32 %v704, 2147483648
        %v706 = vmul.f32 %v705, 1.442695
        %v707 = vpow.pop %v706
        %v708 = vadd.f32 %v707, 1.0
        %v709 = vrcp.pop %v708
        %v710 = vmul.f32 1.0, %v709
        %v712 = vrot.slane %v622, 2
        %v714 = vadd.f32 %v712, %v660
        %v715 = vxor.u32 %v714, 2147483648
        %v716 = vmul.f32 %v715, 1.442695
        %v717 = vpow.pop %v716
        %v718 = vadd.f32 %v717, 1.0
        %v719 = vrcp.pop %v718
        %v720 = vmul.f32 1.0, %v719
        %v721 = vadd.f32 %v699, %v368
        %v722 = vmul.f32 %v710, %v721
        %v723 = vrot.slane %v622, 4
        %v725 = vadd.f32 %v723, %v722
        %v726 = vtanh.pop %v725
        %v727 = vsub.f32 1.0, %v720
        %v728 = vmul.f32 %v727, %v726
        %v729 = vmul.f32 %v720, %v612
        %v730 = vadd.f32 %v728, %v729
        %v731 = vpack.c.bf16 %v730, %v730
        %s732 = scalar_lea.vmem %s303, %s618 [#allocation4]
        %733 = vst [vmem:[%s732] sm:$0x1] %v731
        %s734 = smul.u32 %s616, 2
        %s735 = smul.u32 %s18, 5
        %s736 = sadd.s32 %s734, %s735
        %s737 = smul.u32 %s736, 3
        %s738 = scalar_lea.vmem %s276, %s737 [#allocation3]
        %v739 = vld [vmem:[%s738] sm:$0x7]
        %v740 = vunpack.c.l.bf16 %v739
        %741 = vmatprep.subr.bf16.mxu0 %v458
        %742 = vmatpush1.bf16.msra.mxu0 %v457
        %743 = vmatprep.subr.bf16.mxu0 %v461
        %744 = vmatpush1.bf16.msra.mxu0 %v460
        %745 = vmatprep.subr.bf16.mxu0 %v464
        %746 = vmatpush1.bf16.msra.mxu0 %v463
        %747 = vmatprep.subr.bf16.mxu0 %v467
        %748 = vmatpush1.bf16.msra.mxu0 %v466
        %749 = vmatprep.subr.bf16.mxu0 %v470
        %750 = vmatpush1.bf16.msra.mxu0 %v469
        %751 = vmatprep.subr.bf16.mxu0 %v473
        %752 = vmatpush1.bf16.msra.mxu0 %v472
        %753 = vmatprep.subr.bf16.mxu0 %v476
        %754 = vmatpush1.bf16.msra.mxu0 %v475
        %755 = vmatprep.subr.bf16.mxu0 %v479
        %756 = vmatpush1.bf16.msra.mxu0 %v478
        %757 = vmatprep.subr.bf16.mxu0 0
        %758 = vmatpush1.bf16.msra.mxu0 0
        %759 = vmatprep.subr.bf16.mxu0 0
        %760 = vmatpush1.bf16.msra.mxu0 0
        %761 = vmatprep.subr.bf16.mxu0 0
        %762 = vmatpush1.bf16.msra.mxu0 0
        %763 = vmatprep.subr.bf16.mxu0 0
        %764 = vmatpush1.bf16.msra.mxu0 0
        %765 = vmatprep.subr.bf16.mxu0 0
        %766 = vmatpush1.bf16.msra.mxu0 0
        %767 = vmatprep.subr.bf16.mxu0 0
        %768 = vmatpush1.bf16.msra.mxu0 0
        %769 = vmatprep.subr.bf16.mxu0 0
        %770 = vmatpush1.bf16.msra.mxu0 0
        %771 = vmatprep.subr.bf16.mxu0 0
        %772 = vmatpush1.bf16.msra.mxu0 0
        %773 = vmatprep.mubr.bf16.mxu0 0
        %774 = vmatmul.mubr.bf16.gmra.mrb[0].mxu0 %v731
        %v775 = vpop.f32.mrb[0].mxu0
        %v776 = vadd.f32 0.0, %v775
        %v777 = vpop.f32.mrb[0].mxu0
        %v778 = vadd.f32 0.0, %v777
        %v779 = vpop.f32.mrb[0].mxu0
        %v780 = vpop.f32.mrb[0].mxu0
        %781 = vdwg.mxu0
        %782 = vmatprep.subr.bf16.mxu0 0
        %783 = vmatpush1.bf16.msra.mxu0 %v459
        %784 = vmatprep.subr.bf16.mxu0 0
        %785 = vmatpush1.bf16.msra.mxu0 %v462
        %786 = vmatprep.subr.bf16.mxu0 0
        %787 = vmatpush1.bf16.msra.mxu0 %v465
        %788 = vmatprep.subr.bf16.mxu0 0
        %789 = vmatpush1.bf16.msra.mxu0 %v468
        %790 = vmatprep.subr.bf16.mxu0 0
        %791 = vmatpush1.bf16.msra.mxu0 %v471
        %792 = vmatprep.subr.bf16.mxu0 0
        %793 = vmatpush1.bf16.msra.mxu0 %v474
        %794 = vmatprep.subr.bf16.mxu0 0
        %795 = vmatpush1.bf16.msra.mxu0 %v477
        %796 = vmatprep.subr.bf16.mxu0 0
        %797 = vmatpush1.bf16.msra.mxu0 %v480
        %798 = vmatprep.subr.bf16.mxu0 0
        %799 = vmatpush1.bf16.msra.mxu0 0
        %800 = vmatprep.subr.bf16.mxu0 0
        %801 = vmatpush1.bf16.msra.mxu0 0
        %802 = vmatprep.subr.bf16.mxu0 0
        %803 = vmatpush1.bf16.msra.mxu0 0
        %804 = vmatprep.subr.bf16.mxu0 0
        %805 = vmatpush1.bf16.msra.mxu0 0
        %806 = vmatprep.subr.bf16.mxu0 0
        %807 = vmatpush1.bf16.msra.mxu0 0
        %808 = vmatprep.subr.bf16.mxu0 0
        %809 = vmatpush1.bf16.msra.mxu0 0
        %810 = vmatprep.subr.bf16.mxu0 0
        %811 = vmatpush1.bf16.msra.mxu0 0
        %812 = vmatprep.subr.bf16.mxu0 0
        %813 = vmatpush1.bf16.msra.mxu0 0
        %814 = vmatprep.mubr.bf16.mxu0 0
        %815 = vmatmul.mubr.bf16.gmra.mrb[0].mxu0 %v731
        %v816 = vpop.f32.mrb[0].mxu0
        %v817 = vadd.f32 0.0, %v816
        %v818 = vpop.f32.mrb[0].mxu0
        %v819 = vpop.f32.mrb[0].mxu0
        %v820 = vpop.f32.mrb[0].mxu0
        %821 = vdwg.mxu0
        %v822 = vadd.f32 %v740, %v776
        %v823 = vxor.u32 %v822, 2147483648
        %v824 = vmul.f32 %v823, 1.442695
        %v825 = vpow.pop %v824
        %v826 = vadd.f32 %v825, 1.0
        %v827 = vrcp.pop %v826
        %v828 = vmul.f32 1.0, %v827
        %v830 = vrot.slane %v740, 2
        %v832 = vadd.f32 %v830, %v778
        %v833 = vxor.u32 %v832, 2147483648
        %v834 = vmul.f32 %v833, 1.442695
        %v835 = vpow.pop %v834
        %v836 = vadd.f32 %v835, 1.0
        %v837 = vrcp.pop %v836
        %v838 = vmul.f32 1.0, %v837
        %v839 = vadd.f32 %v817, %v368
        %v840 = vmul.f32 %v828, %v839
        %v841 = vrot.slane %v740, 4
        %v843 = vadd.f32 %v841, %v840
        %v844 = vtanh.pop %v843
        %v845 = vsub.f32 1.0, %v838
        %v846 = vmul.f32 %v845, %v844
        %v847 = vmul.f32 %v838, %v730
        %v848 = vadd.f32 %v846, %v847
        %v849 = vpack.c.bf16 %v848, %v848
        %s850 = scalar_lea.vmem %s303, %s736 [#allocation4]
        %851 = vst [vmem:[%s850] sm:$0x1] %v849
        %s852 = smul.u32 %s616, 3
        %s853 = smul.u32 %s18, 4
        %s854 = sadd.s32 %s852, %s853
        %s855 = smul.u32 %s854, 3
        %s856 = scalar_lea.vmem %s276, %s855 [#allocation3]
        %v857 = vld [vmem:[%s856] sm:$0x7]
        %v858 = vunpack.c.l.bf16 %v857
        %859 = vmatprep.subr.bf16.mxu0 %v458
        %860 = vmatpush1.bf16.msra.mxu0 %v457
        %861 = vmatprep.subr.bf16.mxu0 %v461
        %862 = vmatpush1.bf16.msra.mxu0 %v460
        %863 = vmatprep.subr.bf16.mxu0 %v464
        %864 = vmatpush1.bf16.msra.mxu0 %v463
        %865 = vmatprep.subr.bf16.mxu0 %v467
        %866 = vmatpush1.bf16.msra.mxu0 %v466
        %867 = vmatprep.subr.bf16.mxu0 %v470
        %868 = vmatpush1.bf16.msra.mxu0 %v469
        %869 = vmatprep.subr.bf16.mxu0 %v473
        %870 = vmatpush1.bf16.msra.mxu0 %v472
        %871 = vmatprep.subr.bf16.mxu0 %v476
        %872 = vmatpush1.bf16.msra.mxu0 %v475
        %873 = vmatprep.subr.bf16.mxu0 %v479
        %874 = vmatpush1.bf16.msra.mxu0 %v478
        %875 = vmatprep.subr.bf16.mxu0 0
        %876 = vmatpush1.bf16.msra.mxu0 0
        %877 = vmatprep.subr.bf16.mxu0 0
        %878 = vmatpush1.bf16.msra.mxu0 0
        %879 = vmatprep.subr.bf16.mxu0 0
        %880 = vmatpush1.bf16.msra.mxu0 0
        %881 = vmatprep.subr.bf16.mxu0 0
        %882 = vmatpush1.bf16.msra.mxu0 0
        %883 = vmatprep.subr.bf16.mxu0 0
        %884 = vmatpush1.bf16.msra.mxu0 0
        %885 = vmatprep.subr.bf16.mxu0 0
        %886 = vmatpush1.bf16.msra.mxu0 0
        %887 = vmatprep.subr.bf16.mxu0 0
        %888 = vmatpush1.bf16.msra.mxu0 0
        %889 = vmatprep.subr.bf16.mxu0 0
        %890 = vmatpush1.bf16.msra.mxu0 0
        %891 = vmatprep.mubr.bf16.mxu0 0
        %892 = vmatmul.mubr.bf16.gmra.mrb[0].mxu0 %v849
        %v893 = vpop.f32.mrb[0].mxu0
        %v894 = vadd.f32 0.0, %v893
        %v895 = vpop.f32.mrb[0].mxu0
        %v896 = vadd.f32 0.0, %v895
        %v897 = vpop.f32.mrb[0].mxu0
        %v898 = vpop.f32.mrb[0].mxu0
        %899 = vdwg.mxu0
        %900 = vmatprep.subr.bf16.mxu0 0
        %901 = vmatpush1.bf16.msra.mxu0 %v459
        %902 = vmatprep.subr.bf16.mxu0 0
        %903 = vmatpush1.bf16.msra.mxu0 %v462
        %904 = vmatprep.subr.bf16.mxu0 0
        %905 = vmatpush1.bf16.msra.mxu0 %v465
        %906 = vmatprep.subr.bf16.mxu0 0
        %907 = vmatpush1.bf16.msra.mxu0 %v468
        %908 = vmatprep.subr.bf16.mxu0 0
        %909 = vmatpush1.bf16.msra.mxu0 %v471
        %910 = vmatprep.subr.bf16.mxu0 0
        %911 = vmatpush1.bf16.msra.mxu0 %v474
        %912 = vmatprep.subr.bf16.mxu0 0
        %913 = vmatpush1.bf16.msra.mxu0 %v477
        %914 = vmatprep.subr.bf16.mxu0 0
        %915 = vmatpush1.bf16.msra.mxu0 %v480
        %916 = vmatprep.subr.bf16.mxu0 0
        %917 = vmatpush1.bf16.msra.mxu0 0
        %918 = vmatprep.subr.bf16.mxu0 0
        %919 = vmatpush1.bf16.msra.mxu0 0
        %920 = vmatprep.subr.bf16.mxu0 0
        %921 = vmatpush1.bf16.msra.mxu0 0
        %922 = vmatprep.subr.bf16.mxu0 0
        %923 = vmatpush1.bf16.msra.mxu0 0
        %924 = vmatprep.subr.bf16.mxu0 0
        %925 = vmatpush1.bf16.msra.mxu0 0
        %926 = vmatprep.subr.bf16.mxu0 0
        %927 = vmatpush1.bf16.msra.mxu0 0
        %928 = vmatprep.subr.bf16.mxu0 0
        %929 = vmatpush1.bf16.msra.mxu0 0
        %930 = vmatprep.subr.bf16.mxu0 0
        %931 = vmatpush1.bf16.msra.mxu0 0
        %932 = vmatprep.mubr.bf16.mxu0 0
        %933 = vmatmul.mubr.bf16.gmra.mrb[0].mxu0 %v849
        %v934 = vpop.f32.mrb[0].mxu0
        %v935 = vadd.f32 0.0, %v934
        %v936 = vpop.f32.mrb[0].mxu0
        %v937 = vpop.f32.mrb[0].mxu0
        %v938 = vpop.f32.mrb[0].mxu0
        %939 = vdwg.mxu0
        %v940 = vadd.f32 %v858, %v894
        %v941 = vxor.u32 %v940, 2147483648
        %v942 = vmul.f32 %v941, 1.442695
        %v943 = vpow.pop %v942
        %v944 = vadd.f32 %v943, 1.0
        %v945 = vrcp.pop %v944
        %v946 = vmul.f32 1.0, %v945
        %v948 = vrot.slane %v858, 2
        %v950 = vadd.f32 %v948, %v896
        %v951 = vxor.u32 %v950, 2147483648
        %v952 = vmul.f32 %v951, 1.442695
        %v953 = vpow.pop %v952
        %v954 = vadd.f32 %v953, 1.0
        %v955 = vrcp.pop %v954
        %v956 = vmul.f32 1.0, %v955
        %v957 = vadd.f32 %v935, %v368
        %v958 = vmul.f32 %v946, %v957
        %v959 = vrot.slane %v858, 4
        %v961 = vadd.f32 %v959, %v958
        %v962 = vtanh.pop %v961
        %v963 = vsub.f32 1.0, %v956
        %v964 = vmul.f32 %v963, %v962
        %v965 = vmul.f32 %v956, %v848
        %v966 = vadd.f32 %v964, %v965
        %v967 = vpack.c.bf16 %v966, %v966
        %s968 = scalar_lea.vmem %s303, %s854 [#allocation4]
        %969 = vst [vmem:[%s968] sm:$0x1] %v967
        %s970 = smul.u32 %s616, 4
        %s971 = smul.u32 %s18, 3
        %s972 = sadd.s32 %s970, %s971
        %s973 = smul.u32 %s972, 3
        %s974 = scalar_lea.vmem %s276, %s973 [#allocation3]
        %v975 = vld [vmem:[%s974] sm:$0x7]
        %v976 = vunpack.c.l.bf16 %v975
        %977 = vmatprep.subr.bf16.mxu0 %v458
        %978 = vmatpush1.bf16.msra.mxu0 %v457
        %979 = vmatprep.subr.bf16.mxu0 %v461
        %980 = vmatpush1.bf16.msra.mxu0 %v460
        %981 = vmatprep.subr.bf16.mxu0 %v464
        %982 = vmatpush1.bf16.msra.mxu0 %v463
        %983 = vmatprep.subr.bf16.mxu0 %v467
        %984 = vmatpush1.bf16.msra.mxu0 %v466
        %985 = vmatprep.subr.bf16.mxu0 %v470
        %986 = vmatpush1.bf16.msra.mxu0 %v469
        %987 = vmatprep.subr.bf16.mxu0 %v473
        %988 = vmatpush1.bf16.msra.mxu0 %v472
        %989 = vmatprep.subr.bf16.mxu0 %v476
        %990 = vmatpush1.bf16.msra.mxu0 %v475
        %991 = vmatprep.subr.bf16.mxu0 %v479
        %992 = vmatpush1.bf16.msra.mxu0 %v478
        %993 = vmatprep.subr.bf16.mxu0 0
        %994 = vmatpush1.bf16.msra.mxu0 0
        %995 = vmatprep.subr.bf16.mxu0 0
        %996 = vmatpush1.bf16.msra.mxu0 0
        %997 = vmatprep.subr.bf16.mxu0 0
        %998 = vmatpush1.bf16.msra.mxu0 0
        %999 = vmatprep.subr.bf16.mxu0 0
        %1000 = vmatpush1.bf16.msra.mxu0 0
        %1001 = vmatprep.subr.bf16.mxu0 0
        %1002 = vmatpush1.bf16.msra.mxu0 0
        %1003 = vmatprep.subr.bf16.mxu0 0
        %1004 = vmatpush1.bf16.msra.mxu0 0
        %1005 = vmatprep.subr.bf16.mxu0 0
        %1006 = vmatpush1.bf16.msra.mxu0 0
        %1007 = vmatprep.subr.bf16.mxu0 0
        %1008 = vmatpush1.bf16.msra.mxu0 0
        %1009 = vmatprep.mubr.bf16.mxu0 0
        %1010 = vmatmul.mubr.bf16.gmra.mrb[0].mxu0 %v967
        %v1011 = vpop.f32.mrb[0].mxu0
        %v1012 = vadd.f32 0.0, %v1011
        %v1013 = vpop.f32.mrb[0].mxu0
        %v1014 = vadd.f32 0.0, %v1013
        %v1015 = vpop.f32.mrb[0].mxu0
        %v1016 = vpop.f32.mrb[0].mxu0
        %1017 = vdwg.mxu0
        %1018 = vmatprep.subr.bf16.mxu0 0
        %1019 = vmatpush1.bf16.msra.mxu0 %v459
        %1020 = vmatprep.subr.bf16.mxu0 0
        %1021 = vmatpush1.bf16.msra.mxu0 %v462
        %1022 = vmatprep.subr.bf16.mxu0 0
        %1023 = vmatpush1.bf16.msra.mxu0 %v465
        %1024 = vmatprep.subr.bf16.mxu0 0
        %1025 = vmatpush1.bf16.msra.mxu0 %v468
        %1026 = vmatprep.subr.bf16.mxu0 0
        %1027 = vmatpush1.bf16.msra.mxu0 %v471
        %1028 = vmatprep.subr.bf16.mxu0 0
        %1029 = vmatpush1.bf16.msra.mxu0 %v474
        %1030 = vmatprep.subr.bf16.mxu0 0
        %1031 = vmatpush1.bf16.msra.mxu0 %v477
        %1032 = vmatprep.subr.bf16.mxu0 0
        %1033 = vmatpush1.bf16.msra.mxu0 %v480
        %1034 = vmatprep.subr.bf16.mxu0 0
        %1035 = vmatpush1.bf16.msra.mxu0 0
        %1036 = vmatprep.subr.bf16.mxu0 0
        %1037 = vmatpush1.bf16.msra.mxu0 0
        %1038 = vmatprep.subr.bf16.mxu0 0
        %1039 = vmatpush1.bf16.msra.mxu0 0
        %1040 = vmatprep.subr.bf16.mxu0 0
        %1041 = vmatpush1.bf16.msra.mxu0 0
        %1042 = vmatprep.subr.bf16.mxu0 0
        %1043 = vmatpush1.bf16.msra.mxu0 0
        %1044 = vmatprep.subr.bf16.mxu0 0
        %1045 = vmatpush1.bf16.msra.mxu0 0
        %1046 = vmatprep.subr.bf16.mxu0 0
        %1047 = vmatpush1.bf16.msra.mxu0 0
        %1048 = vmatprep.subr.bf16.mxu0 0
        %1049 = vmatpush1.bf16.msra.mxu0 0
        %1050 = vmatprep.mubr.bf16.mxu0 0
        %1051 = vmatmul.mubr.bf16.gmra.mrb[0].mxu0 %v967
        %v1052 = vpop.f32.mrb[0].mxu0
        %v1053 = vadd.f32 0.0, %v1052
        %v1054 = vpop.f32.mrb[0].mxu0
        %v1055 = vpop.f32.mrb[0].mxu0
        %v1056 = vpop.f32.mrb[0].mxu0
        %1057 = vdwg.mxu0
        %v1058 = vadd.f32 %v976, %v1012
        %v1059 = vxor.u32 %v1058, 2147483648
        %v1060 = vmul.f32 %v1059, 1.442695
        %v1061 = vpow.pop %v1060
        %v1062 = vadd.f32 %v1061, 1.0
        %v1063 = vrcp.pop %v1062
        %v1064 = vmul.f32 1.0, %v1063
        %v1066 = vrot.slane %v976, 2
        %v1068 = vadd.f32 %v1066, %v1014
        %v1069 = vxor.u32 %v1068, 2147483648
        %v1070 = vmul.f32 %v1069, 1.442695
        %v1071 = vpow.pop %v1070
        %v1072 = vadd.f32 %v1071, 1.0
        %v1073 = vrcp.pop %v1072
        %v1074 = vmul.f32 1.0, %v1073
        %v1075 = vadd.f32 %v1053, %v368
        %v1076 = vmul.f32 %v1064, %v1075
        %v1077 = vrot.slane %v976, 4
        %v1079 = vadd.f32 %v1077, %v1076
        %v1080 = vtanh.pop %v1079
        %v1081 = vsub.f32 1.0, %v1074
        %v1082 = vmul.f32 %v1081, %v1080
        %v1083 = vmul.f32 %v1074, %v966
        %v1084 = vadd.f32 %v1082, %v1083
        %v1085 = vpack.c.bf16 %v1084, %v1084
        %s1086 = scalar_lea.vmem %s303, %s972 [#allocation4]
        %1087 = vst [vmem:[%s1086] sm:$0x1] %v1085
        %s1088 = smul.u32 %s616, 5
        %s1089 = smul.u32 %s18, 2
        %s1090 = sadd.s32 %s1088, %s1089
        %s1091 = smul.u32 %s1090, 3
        %s1092 = scalar_lea.vmem %s276, %s1091 [#allocation3]
        %v1093 = vld [vmem:[%s1092] sm:$0x7]
        %v1094 = vunpack.c.l.bf16 %v1093
        %1095 = vmatprep.subr.bf16.mxu0 %v458
        %1096 = vmatpush1.bf16.msra.mxu0 %v457
        %1097 = vmatprep.subr.bf16.mxu0 %v461
        %1098 = vmatpush1.bf16.msra.mxu0 %v460
        %1099 = vmatprep.subr.bf16.mxu0 %v464
        %1100 = vmatpush1.bf16.msra.mxu0 %v463
        %1101 = vmatprep.subr.bf16.mxu0 %v467
        %1102 = vmatpush1.bf16.msra.mxu0 %v466
        %1103 = vmatprep.subr.bf16.mxu0 %v470
        %1104 = vmatpush1.bf16.msra.mxu0 %v469
        %1105 = vmatprep.subr.bf16.mxu0 %v473
        %1106 = vmatpush1.bf16.msra.mxu0 %v472
        %1107 = vmatprep.subr.bf16.mxu0 %v476
        %1108 = vmatpush1.bf16.msra.mxu0 %v475
        %1109 = vmatprep.subr.bf16.mxu0 %v479
        %1110 = vmatpush1.bf16.msra.mxu0 %v478
        %1111 = vmatprep.subr.bf16.mxu0 0
        %1112 = vmatpush1.bf16.msra.mxu0 0
        %1113 = vmatprep.subr.bf16.mxu0 0
        %1114 = vmatpush1.bf16.msra.mxu0 0
        %1115 = vmatprep.subr.bf16.mxu0 0
        %1116 = vmatpush1.bf16.msra.mxu0 0
        %1117 = vmatprep.subr.bf16.mxu0 0
        %1118 = vmatpush1.bf16.msra.mxu0 0
        %1119 = vmatprep.subr.bf16.mxu0 0
        %1120 = vmatpush1.bf16.msra.mxu0 0
        %1121 = vmatprep.subr.bf16.mxu0 0
        %1122 = vmatpush1.bf16.msra.mxu0 0
        %1123 = vmatprep.subr.bf16.mxu0 0
        %1124 = vmatpush1.bf16.msra.mxu0 0
        %1125 = vmatprep.subr.bf16.mxu0 0
        %1126 = vmatpush1.bf16.msra.mxu0 0
        %1127 = vmatprep.mubr.bf16.mxu0 0
        %1128 = vmatmul.mubr.bf16.gmra.mrb[0].mxu0 %v1085
        %v1129 = vpop.f32.mrb[0].mxu0
        %v1130 = vadd.f32 0.0, %v1129
        %v1131 = vpop.f32.mrb[0].mxu0
        %v1132 = vadd.f32 0.0, %v1131
        %v1133 = vpop.f32.mrb[0].mxu0
        %v1134 = vpop.f32.mrb[0].mxu0
        %1135 = vdwg.mxu0
        %1136 = vmatprep.subr.bf16.mxu0 0
        %1137 = vmatpush1.bf16.msra.mxu0 %v459
        %1138 = vmatprep.subr.bf16.mxu0 0
        %1139 = vmatpush1.bf16.msra.mxu0 %v462
        %1140 = vmatprep.subr.bf16.mxu0 0
        %1141 = vmatpush1.bf16.msra.mxu0 %v465
        %1142 = vmatprep.subr.bf16.mxu0 0
        %1143 = vmatpush1.bf16.msra.mxu0 %v468
        %1144 = vmatprep.subr.bf16.mxu0 0
        %1145 = vmatpush1.bf16.msra.mxu0 %v471
        %1146 = vmatprep.subr.bf16.mxu0 0
        %1147 = vmatpush1.bf16.msra.mxu0 %v474
        %1148 = vmatprep.subr.bf16.mxu0 0
        %1149 = vmatpush1.bf16.msra.mxu0 %v477
        %1150 = vmatprep.subr.bf16.mxu0 0
        %1151 = vmatpush1.bf16.msra.mxu0 %v480
        %1152 = vmatprep.subr.bf16.mxu0 0
        %1153 = vmatpush1.bf16.msra.mxu0 0
        %1154 = vmatprep.subr.bf16.mxu0 0
        %1155 = vmatpush1.bf16.msra.mxu0 0
        %1156 = vmatprep.subr.bf16.mxu0 0
        %1157 = vmatpush1.bf16.msra.mxu0 0
        %1158 = vmatprep.subr.bf16.mxu0 0
        %1159 = vmatpush1.bf16.msra.mxu0 0
        %1160 = vmatprep.subr.bf16.mxu0 0
        %1161 = vmatpush1.bf16.msra.mxu0 0
        %1162 = vmatprep.subr.bf16.mxu0 0
        %1163 = vmatpush1.bf16.msra.mxu0 0
        %1164 = vmatprep.subr.bf16.mxu0 0
        %1165 = vmatpush1.bf16.msra.mxu0 0
        %1166 = vmatprep.subr.bf16.mxu0 0
        %1167 = vmatpush1.bf16.msra.mxu0 0
        %1168 = vmatprep.mubr.bf16.mxu0 0
        %1169 = vmatmul.mubr.bf16.gmra.mrb[0].mxu0 %v1085
        %v1170 = vpop.f32.mrb[0].mxu0
        %v1171 = vadd.f32 0.0, %v1170
        %v1172 = vpop.f32.mrb[0].mxu0
        %v1173 = vpop.f32.mrb[0].mxu0
        %v1174 = vpop.f32.mrb[0].mxu0
        %1175 = vdwg.mxu0
        %v1176 = vadd.f32 %v1094, %v1130
        %v1177 = vxor.u32 %v1176, 2147483648
        %v1178 = vmul.f32 %v1177, 1.442695
        %v1179 = vpow.pop %v1178
        %v1180 = vadd.f32 %v1179, 1.0
        %v1181 = vrcp.pop %v1180
        %v1182 = vmul.f32 1.0, %v1181
        %v1184 = vrot.slane %v1094, 2
        %v1186 = vadd.f32 %v1184, %v1132
        %v1187 = vxor.u32 %v1186, 2147483648
        %v1188 = vmul.f32 %v1187, 1.442695
        %v1189 = vpow.pop %v1188
        %v1190 = vadd.f32 %v1189, 1.0
        %v1191 = vrcp.pop %v1190
        %v1192 = vmul.f32 1.0, %v1191
        %v1193 = vadd.f32 %v1171, %v368
        %v1194 = vmul.f32 %v1182, %v1193
        %v1195 = vrot.slane %v1094, 4
        %v1197 = vadd.f32 %v1195, %v1194
        %v1198 = vtanh.pop %v1197
        %v1199 = vsub.f32 1.0, %v1192
        %v1200 = vmul.f32 %v1199, %v1198
        %v1201 = vmul.f32 %v1192, %v1084
        %v1202 = vadd.f32 %v1200, %v1201
        %v1203 = vpack.c.bf16 %v1202, %v1202
        %s1204 = scalar_lea.vmem %s303, %s1090 [#allocation4]
        %1205 = vst [vmem:[%s1204] sm:$0x1] %v1203
        %s1206 = smul.u32 %s616, 6
        %s1207 = sadd.s32 %s1206, %s18
        %s1208 = smul.u32 %s1207, 3
        %s1209 = scalar_lea.vmem %s276, %s1208 [#allocation3]
        %v1210 = vld [vmem:[%s1209] sm:$0x7]
        %v1211 = vunpack.c.l.bf16 %v1210
        %1212 = vmatprep.subr.bf16.mxu0 %v458
        %1213 = vmatpush1.bf16.msra.mxu0 %v457
        %1214 = vmatprep.subr.bf16.mxu0 %v461
        %1215 = vmatpush1.bf16.msra.mxu0 %v460
        %1216 = vmatprep.subr.bf16.mxu0 %v464
        %1217 = vmatpush1.bf16.msra.mxu0 %v463
        %1218 = vmatprep.subr.bf16.mxu0 %v467
        %1219 = vmatpush1.bf16.msra.mxu0 %v466
        %1220 = vmatprep.subr.bf16.mxu0 %v470
        %1221 = vmatpush1.bf16.msra.mxu0 %v469
        %1222 = vmatprep.subr.bf16.mxu0 %v473
        %1223 = vmatpush1.bf16.msra.mxu0 %v472
        %1224 = vmatprep.subr.bf16.mxu0 %v476
        %1225 = vmatpush1.bf16.msra.mxu0 %v475
        %1226 = vmatprep.subr.bf16.mxu0 %v479
        %1227 = vmatpush1.bf16.msra.mxu0 %v478
        %1228 = vmatprep.subr.bf16.mxu0 0
        %1229 = vmatpush1.bf16.msra.mxu0 0
        %1230 = vmatprep.subr.bf16.mxu0 0
        %1231 = vmatpush1.bf16.msra.mxu0 0
        %1232 = vmatprep.subr.bf16.mxu0 0
        %1233 = vmatpush1.bf16.msra.mxu0 0
        %1234 = vmatprep.subr.bf16.mxu0 0
        %1235 = vmatpush1.bf16.msra.mxu0 0
        %1236 = vmatprep.subr.bf16.mxu0 0
        %1237 = vmatpush1.bf16.msra.mxu0 0
        %1238 = vmatprep.subr.bf16.mxu0 0
        %1239 = vmatpush1.bf16.msra.mxu0 0
        %1240 = vmatprep.subr.bf16.mxu0 0
        %1241 = vmatpush1.bf16.msra.mxu0 0
        %1242 = vmatprep.subr.bf16.mxu0 0
        %1243 = vmatpush1.bf16.msra.mxu0 0
        %1244 = vmatprep.mubr.bf16.mxu0 0
        %1245 = vmatmul.mubr.bf16.gmra.mrb[0].mxu0 %v1203
        %v1246 = vpop.f32.mrb[0].mxu0
        %v1247 = vadd.f32 0.0, %v1246
        %v1248 = vpop.f32.mrb[0].mxu0
        %v1249 = vadd.f32 0.0, %v1248
        %v1250 = vpop.f32.mrb[0].mxu0
        %v1251 = vpop.f32.mrb[0].mxu0
        %1252 = vdwg.mxu0
        %1253 = vmatprep.subr.bf16.mxu0 0
        %1254 = vmatpush1.bf16.msra.mxu0 %v459
        %1255 = vmatprep.subr.bf16.mxu0 0
        %1256 = vmatpush1.bf16.msra.mxu0 %v462
        %1257 = vmatprep.subr.bf16.mxu0 0
        %1258 = vmatpush1.bf16.msra.mxu0 %v465
        %1259 = vmatprep.subr.bf16.mxu0 0
        %1260 = vmatpush1.bf16.msra.mxu0 %v468
        %1261 = vmatprep.subr.bf16.mxu0 0
        %1262 = vmatpush1.bf16.msra.mxu0 %v471
        %1263 = vmatprep.subr.bf16.mxu0 0
        %1264 = vmatpush1.bf16.msra.mxu0 %v474
        %1265 = vmatprep.subr.bf16.mxu0 0
        %1266 = vmatpush1.bf16.msra.mxu0 %v477
        %1267 = vmatprep.subr.bf16.mxu0 0
        %1268 = vmatpush1.bf16.msra.mxu0 %v480
        %1269 = vmatprep.subr.bf16.mxu0 0
        %1270 = vmatpush1.bf16.msra.mxu0 0
        %1271 = vmatprep.subr.bf16.mxu0 0
        %1272 = vmatpush1.bf16.msra.mxu0 0
        %1273 = vmatprep.subr.bf16.mxu0 0
        %1274 = vmatpush1.bf16.msra.mxu0 0
        %1275 = vmatprep.subr.bf16.mxu0 0
        %1276 = vmatpush1.bf16.msra.mxu0 0
        %1277 = vmatprep.subr.bf16.mxu0 0
        %1278 = vmatpush1.bf16.msra.mxu0 0
        %1279 = vmatprep.subr.bf16.mxu0 0
        %1280 = vmatpush1.bf16.msra.mxu0 0
        %1281 = vmatprep.subr.bf16.mxu0 0
        %1282 = vmatpush1.bf16.msra.mxu0 0
        %1283 = vmatprep.subr.bf16.mxu0 0
        %1284 = vmatpush1.bf16.msra.mxu0 0
        %1285 = vmatprep.mubr.bf16.mxu0 0
        %1286 = vmatmul.mubr.bf16.gmra.mrb[0].mxu0 %v1203
        %v1287 = vpop.f32.mrb[0].mxu0
        %v1288 = vadd.f32 0.0, %v1287
        %v1289 = vpop.f32.mrb[0].mxu0
        %v1290 = vpop.f32.mrb[0].mxu0
        %v1291 = vpop.f32.mrb[0].mxu0
        %1292 = vdwg.mxu0
        %v1293 = vadd.f32 %v1211, %v1247
        %v1294 = vxor.u32 %v1293, 2147483648
        %v1295 = vmul.f32 %v1294, 1.442695
        %v1296 = vpow.pop %v1295
        %v1297 = vadd.f32 %v1296, 1.0
        %v1298 = vrcp.pop %v1297
        %v1299 = vmul.f32 1.0, %v1298
        %v1301 = vrot.slane %v1211, 2
        %v1303 = vadd.f32 %v1301, %v1249
        %v1304 = vxor.u32 %v1303, 2147483648
        %v1305 = vmul.f32 %v1304, 1.442695
        %v1306 = vpow.pop %v1305
        %v1307 = vadd.f32 %v1306, 1.0
        %v1308 = vrcp.pop %v1307
        %v1309 = vmul.f32 1.0, %v1308
        %v1310 = vadd.f32 %v1288, %v368
        %v1311 = vmul.f32 %v1299, %v1310
        %v1312 = vrot.slane %v1211, 4
        %v1314 = vadd.f32 %v1312, %v1311
        %v1315 = vtanh.pop %v1314
        %v1316 = vsub.f32 1.0, %v1309
        %v1317 = vmul.f32 %v1316, %v1315
        %v1318 = vmul.f32 %v1309, %v1202
        %v1319 = vadd.f32 %v1317, %v1318
        %v1320 = vpack.c.bf16 %v1319, %v1319
        %s1321 = scalar_lea.vmem %s303, %s1207 [#allocation4]
        %1322 = vst [vmem:[%s1321] sm:$0x1] %v1320
        %s1323 = smul.u32 %s616, 7
        %s1324 = smul.u32 %s1323, 3
        %s1325 = scalar_lea.vmem %s276, %s1324 [#allocation3]
        %v1326 = vld [vmem:[%s1325] sm:$0x7]
        %v1327 = vunpack.c.l.bf16 %v1326
        %1328 = vmatprep.subr.bf16.mxu0 %v458
        %1329 = vmatpush1.bf16.msra.mxu0 %v457
        %1330 = vmatprep.subr.bf16.mxu0 %v461
        %1331 = vmatpush1.bf16.msra.mxu0 %v460
        %1332 = vmatprep.subr.bf16.mxu0 %v464
        %1333 = vmatpush1.bf16.msra.mxu0 %v463
        %1334 = vmatprep.subr.bf16.mxu0 %v467
        %1335 = vmatpush1.bf16.msra.mxu0 %v466
        %1336 = vmatprep.subr.bf16.mxu0 %v470
        %1337 = vmatpush1.bf16.msra.mxu0 %v469
        %1338 = vmatprep.subr.bf16.mxu0 %v473
        %1339 = vmatpush1.bf16.msra.mxu0 %v472
        %1340 = vmatprep.subr.bf16.mxu0 %v476
        %1341 = vmatpush1.bf16.msra.mxu0 %v475
        %1342 = vmatprep.subr.bf16.mxu0 %v479
        %1343 = vmatpush1.bf16.msra.mxu0 %v478
        %1344 = vmatprep.subr.bf16.mxu0 0
        %1345 = vmatpush1.bf16.msra.mxu0 0
        %1346 = vmatprep.subr.bf16.mxu0 0
        %1347 = vmatpush1.bf16.msra.mxu0 0
        %1348 = vmatprep.subr.bf16.mxu0 0
        %1349 = vmatpush1.bf16.msra.mxu0 0
        %1350 = vmatprep.subr.bf16.mxu0 0
        %1351 = vmatpush1.bf16.msra.mxu0 0
        %1352 = vmatprep.subr.bf16.mxu0 0
        %1353 = vmatpush1.bf16.msra.mxu0 0
        %1354 = vmatprep.subr.bf16.mxu0 0
        %1355 = vmatpush1.bf16.msra.mxu0 0
        %1356 = vmatprep.subr.bf16.mxu0 0
        %1357 = vmatpush1.bf16.msra.mxu0 0
        %1358 = vmatprep.subr.bf16.mxu0 0
        %1359 = vmatpush1.bf16.msra.mxu0 0
        %1360 = vmatprep.mubr.bf16.mxu0 0
        %1361 = vmatmul.mubr.bf16.gmra.mrb[0].mxu0 %v1320
        %v1362 = vpop.f32.mrb[0].mxu0
        %v1363 = vadd.f32 0.0, %v1362
        %v1364 = vpop.f32.mrb[0].mxu0
        %v1365 = vadd.f32 0.0, %v1364
        %v1366 = vpop.f32.mrb[0].mxu0
        %v1367 = vpop.f32.mrb[0].mxu0
        %1368 = vdwg.mxu0
        %1369 = vmatprep.subr.bf16.mxu0 0
        %1370 = vmatpush1.bf16.msra.mxu0 %v459
        %1371 = vmatprep.subr.bf16.mxu0 0
        %1372 = vmatpush1.bf16.msra.mxu0 %v462
        %1373 = vmatprep.subr.bf16.mxu0 0
        %1374 = vmatpush1.bf16.msra.mxu0 %v465
        %1375 = vmatprep.subr.bf16.mxu0 0
        %1376 = vmatpush1.bf16.msra.mxu0 %v468
        %1377 = vmatprep.subr.bf16.mxu0 0
        %1378 = vmatpush1.bf16.msra.mxu0 %v471
        %1379 = vmatprep.subr.bf16.mxu0 0
        %1380 = vmatpush1.bf16.msra.mxu0 %v474
        %1381 = vmatprep.subr.bf16.mxu0 0
        %1382 = vmatpush1.bf16.msra.mxu0 %v477
        %1383 = vmatprep.subr.bf16.mxu0 0
        %1384 = vmatpush1.bf16.msra.mxu0 %v480
        %1385 = vmatprep.subr.bf16.mxu0 0
        %1386 = vmatpush1.bf16.msra.mxu0 0
        %1387 = vmatprep.subr.bf16.mxu0 0
        %1388 = vmatpush1.bf16.msra.mxu0 0
        %1389 = vmatprep.subr.bf16.mxu0 0
        %1390 = vmatpush1.bf16.msra.mxu0 0
        %1391 = vmatprep.subr.bf16.mxu0 0
        %1392 = vmatpush1.bf16.msra.mxu0 0
        %1393 = vmatprep.subr.bf16.mxu0 0
        %1394 = vmatpush1.bf16.msra.mxu0 0
        %1395 = vmatprep.subr.bf16.mxu0 0
        %1396 = vmatpush1.bf16.msra.mxu0 0
        %1397 = vmatprep.subr.bf16.mxu0 0
        %1398 = vmatpush1.bf16.msra.mxu0 0
        %1399 = vmatprep.subr.bf16.mxu0 0
        %1400 = vmatpush1.bf16.msra.mxu0 0
        %1401 = vmatprep.mubr.bf16.mxu0 0
        %1402 = vmatmul.mubr.bf16.gmra.mrb[0].mxu0 %v1320
        %v1403 = vpop.f32.mrb[0].mxu0
        %v1404 = vadd.f32 0.0, %v1403
        %v1405 = vpop.f32.mrb[0].mxu0
        %v1406 = vpop.f32.mrb[0].mxu0
        %v1407 = vpop.f32.mrb[0].mxu0
        %1408 = vdwg.mxu0
        %v1409 = vadd.f32 %v1327, %v1363
        %v1410 = vxor.u32 %v1409, 2147483648
        %v1411 = vmul.f32 %v1410, 1.442695
        %v1412 = vpow.pop %v1411
        %v1413 = vadd.f32 %v1412, 1.0
        %v1414 = vrcp.pop %v1413
        %v1415 = vmul.f32 1.0, %v1414
        %v1417 = vrot.slane %v1327, 2
        %v1419 = vadd.f32 %v1417, %v1365
        %v1420 = vxor.u32 %v1419, 2147483648
        %v1421 = vmul.f32 %v1420, 1.442695
        %v1422 = vpow.pop %v1421
        %v1423 = vadd.f32 %v1422, 1.0
        %v1424 = vrcp.pop %v1423
        %v1425 = vmul.f32 1.0, %v1424
        %v1426 = vadd.f32 %v1404, %v368
        %v1427 = vmul.f32 %v1415, %v1426
        %v1428 = vrot.slane %v1327, 4
        %v1430 = vadd.f32 %v1428, %v1427
        %v1431 = vtanh.pop %v1430
        %v1432 = vsub.f32 1.0, %v1425
        %v1433 = vmul.f32 %v1432, %v1431
        %v1434 = vmul.f32 %v1425, %v1319
        %v1435 = vadd.f32 %v1433, %v1434
        %v1436 = vpack.c.bf16 %v1435, %v1435
        %s1437 = scalar_lea.vmem %s303, %s1323 [#allocation4]
        %1438 = vst [vmem:[%s1437] sm:$0x1] %v1436
        %1439 = vst [vmem:[#allocation2] sm:$0x3] %v1435
        %s1440 = sand.u32 %s136, 1
        %s1441 = sand.u32 %s136, 1
        %s1442 = smul.addr %s1441, 8
        %s1443 = scalar_lea.vmem [#allocation4], %s1442
        // Predicated region
        $region78: #{birnn3_forward.2} parent=68 // pred_check
          %p1444 = pneg %p146
        $region79: #{birnn3_forward.2} parent=68 // pred_check_branch
          %1446 = sbr.rel (%p1444) target = $region81
        $region80: #{birnn3_forward.2} parent=68 // pred_region
          %s1447 = ssub.s32 1, %s18
          %s1448 = smul.u32 %s1447, %s19
          %s1449 = ssub.s32 0, %s19
          %s1450 = smul.u32 %s18, %s1449
          %s1451 = sadd.s32 %s1448, %s1450
          %s1452 = smul.u32 8, %s1451
          %s1453 = smul.addr %s1452, 2
          %s1454 = sadd.s32 %s18, %s1453
          %s1455 = scalar_lea.vmem %s3, %s1454
          // Predicated region
          $region82: #{birnn3_forward.2} parent=80 // pred_check
            _
          $region83: #{birnn3_forward.2} parent=80 // pred_check_branch
            %1457 = sbr.rel (0) target = $region85
          $region84: #{birnn3_forward.2} parent=80 // pred_region
            // Predicated region
            $region86: #{birnn3_forward.2} parent=84 // pred_check
              _
            $region87: #{birnn3_forward.2} parent=84 // pred_check_branch
              %1459 = sbr.rel target = $region89
            $region88: #{birnn3_forward.2} parent=84 // pred_region
              // Predicated region
              $region101: #{birnn3_forward.2} parent=88 // pred_check
                _
              $region102: #{birnn3_forward.2} parent=88 // pred_check_branch
                %1488 = sbr.rel (0) target = $region104
              $region103: #{birnn3_forward.2} parent=88 // pred_region
                loop: start=0, step=1, limit=1
                $region105: #{birnn3_forward.2} parent=103 // loop_pre_header
                  _
                $region106: #{birnn3_forward.2} parent=103 // loop_header
                  %s1490 = sphi 0, %s1494
                  %p1491 = scmp.ge.s32.totalorder %s1490, 1
                  %s1495 = sphi %s1443, %s1443
                  %s1496 = sphi %s1455, %s1455
                $region107: #{birnn3_forward.2} parent=103 // loop_header_branch
                  %1493 = sbr.rel (%p1491) target = $region111
                $region108: #{birnn3_forward.2} parent=103 // loop_body
                  _
                $region109: #{birnn3_forward.2} parent=103 // loop_footer
                  %s1494 = sadd.s32 1, %s1490
                $region110: #{birnn3_forward.2} parent=103 // loop_footer_branch
                  %1489 = sbr.rel target = $region106
                $region111: #{birnn3_forward.2} parent=103 // loop_exit
                  _
                loop: start=0, step=1, limit=1
                $region112: #{birnn3_forward.2} parent=103 // loop_pre_header
                  _
                $region113: #{birnn3_forward.2} parent=103 // loop_header
                  %s1499 = sphi 0, %s1503
                  %p1500 = scmp.ge.s32.totalorder %s1499, 1
                  %s1504 = sphi %s1443, %s1443
                  %s1505 = sphi %s1455, %s1455
                $region114: #{birnn3_forward.2} parent=103 // loop_header_branch
                  %1502 = sbr.rel (%p1500) target = $region118
                $region115: #{birnn3_forward.2} parent=103 // loop_body
                  %v1506 = vld [vmem:[%s1504] sm:$0x1]
                  %1507 = vst [vmem:[%s1505] sm:$0x1] %v1506
                  %v1508 = vld [vmem:[%s1504 + $0x1] sm:$0x1]
                  %1509 = vst [vmem:[%s1505 + $0x2] sm:$0x1] %v1508
                  %v1510 = vld [vmem:[%s1504 + $0x2] sm:$0x1]
                  %1511 = vst [vmem:[%s1505 + $0x4] sm:$0x1] %v1510
                  %v1512 = vld [vmem:[%s1504 + $0x3] sm:$0x1]
                  %1513 = vst [vmem:[%s1505 + $0x6] sm:$0x1] %v1512
                  %v1514 = vld [vmem:[%s1504 + $0x4] sm:$0x1]
                  %1515 = vst [vmem:[%s1505 + $0x8] sm:$0x1] %v1514
                  %v1516 = vld [vmem:[%s1504 + $0x5] sm:$0x1]
                  %1517 = vst [vmem:[%s1505 + $0xa] sm:$0x1] %v1516
                  %v1518 = vld [vmem:[%s1504 + $0x6] sm:$0x1]
                  %1519 = vst [vmem:[%s1505 + $0xc] sm:$0x1] %v1518
                  %v1520 = vld [vmem:[%s1504 + $0x7] sm:$0x1]
                  %1521 = vst [vmem:[%s1505 + $0xe] sm:$0x1] %v1520
                $region116: #{birnn3_forward.2} parent=103 // loop_footer
                  %s1503 = sadd.s32 1, %s1499
                $region117: #{birnn3_forward.2} parent=103 // loop_footer_branch
                  %1498 = sbr.rel target = $region113
                $region118: #{birnn3_forward.2} parent=103 // loop_exit
                  _
              $region104: #{birnn3_forward.2} parent=88 // pred_fallthru
                _
            $region89: #{birnn3_forward.2} parent=84 // pred_fallthru
              _
            // Predicated region
            $region90: #{birnn3_forward.2} parent=84 // pred_check
              _
            $region91: #{birnn3_forward.2} parent=84 // pred_check_branch
              %1461 = sbr.rel (0) target = $region93
            $region92: #{birnn3_forward.2} parent=84 // pred_region
              loop: start=0, step=1, limit=1
              $region94: #{birnn3_forward.2} parent=92 // loop_pre_header
                _
              $region95: #{birnn3_forward.2} parent=92 // loop_header
                %s1464 = sphi 0, %s1468
                %p1465 = scmp.ge.s32.totalorder %s1464, 1
                %s1469 = sphi %s1443, %s1443
                %s1470 = sphi %s1455, %s1455
              $region96: #{birnn3_forward.2} parent=92 // loop_header_branch
                %1467 = sbr.rel (%p1465) target = $region100
              $region97: #{birnn3_forward.2} parent=92 // loop_body
                %v1471 = vld [vmem:[%s1469] sm:$0x1]
                %1472 = vst [vmem:[%s1470] sm:$0x1] %v1471
                %v1473 = vld [vmem:[%s1469 + $0x1] sm:$0x1]
                %1474 = vst [vmem:[%s1470 + $0x2] sm:$0x1] %v1473
                %v1475 = vld [vmem:[%s1469 + $0x2] sm:$0x1]
                %1476 = vst [vmem:[%s1470 + $0x4] sm:$0x1] %v1475
                %v1477 = vld [vmem:[%s1469 + $0x3] sm:$0x1]
                %1478 = vst [vmem:[%s1470 + $0x6] sm:$0x1] %v1477
                %v1479 = vld [vmem:[%s1469 + $0x4] sm:$0x1]
                %1480 = vst [vmem:[%s1470 + $0x8] sm:$0x1] %v1479
                %v1481 = vld [vmem:[%s1469 + $0x5] sm:$0x1]
                %1482 = vst [vmem:[%s1470 + $0xa] sm:$0x1] %v1481
                %v1483 = vld [vmem:[%s1469 + $0x6] sm:$0x1]
                %1484 = vst [vmem:[%s1470 + $0xc] sm:$0x1] %v1483
                %v1485 = vld [vmem:[%s1469 + $0x7] sm:$0x1]
                %1486 = vst [vmem:[%s1470 + $0xe] sm:$0x1] %v1485
              $region98: #{birnn3_forward.2} parent=92 // loop_footer
                %s1468 = sadd.s32 1, %s1464
              $region99: #{birnn3_forward.2} parent=92 // loop_footer_branch
                %1463 = sbr.rel target = $region95
              $region100: #{birnn3_forward.2} parent=92 // loop_exit
                _
            $region93: #{birnn3_forward.2} parent=84 // pred_fallthru
              _
          $region85: #{birnn3_forward.2} parent=80 // pred_fallthru
            _
          %1522 = vnop
        $region81: #{birnn3_forward.2} parent=68 // pred_fallthru
          _
      $region69: #{birnn3_forward.2} parent=5 // pred_fallthru
        _
      %p1523 = scmp.le.s32.totalorder 2, %s9
      // Predicated region
      $region119: #{birnn3_forward.2} parent=5 // pred_check
        %p1524 = pneg %p1523
      $region120: #{birnn3_forward.2} parent=5 // pred_check_branch
        %1526 = sbr.rel (%p1524) target = $region122
      $region121: #{birnn3_forward.2} parent=5 // pred_region
        %s1527 = ssub.s32 %s9, 2
        // Predicated region
        $region123: #{birnn3_forward.2} parent=121 // pred_check
          %p1528 = pneg %p152
        $region124: #{birnn3_forward.2} parent=121 // pred_check_branch
          %1530 = sbr.rel (%p1528) target = $region126
        $region125: #{birnn3_forward.2} parent=121 // pred_region
          %s1531 = sand.u32 %s137, 1
          %s1532 = sand.u32 %s137, 1
          %s1533 = smul.addr %s1532, 8
          %s1534 = scalar_lea.vmem [#allocation4], %s1533
        $region126: #{birnn3_forward.2} parent=121 // pred_fallthru
          _
      $region122: #{birnn3_forward.2} parent=5 // pred_fallthru
        _
    $region6: #{birnn3_forward.2} parent=1 // loop_footer
      %s13 = sadd.s32 1, %s9
    $region7: #{birnn3_forward.2} parent=1 // loop_footer_branch
      %8 = sbr.rel target = $region3
    $region8: #{birnn3_forward.2} parent=1 // loop_exit
      _

</llo_original>
